<compile_context>
chip_gen: v7x
topology: tpu7x:2x2x1
jax: 0.10.0
libtpu: 0.0.40
codegen_flags: <defaults>
</compile_context>

<pallas_src>
import functools
import math

import jax
import jax.numpy as jnp
from jax.experimental import pallas as pl
from jax.experimental.pallas import tpu as pltpu

EPS = 1e-5  # nn.LayerNorm default


def _device_kind():
    try:
        return jax.devices()[0].device_kind.lower()
    except Exception:
        return ""


def _vmem_limit_bytes(kind):
    if "v7" in kind:
        return 48 * 1024 * 1024          # 64 MiB physical: leave headroom
    if "v5" in kind or "v6" in kind:
        return 96 * 1024 * 1024          # 128 MiB physical
    return None                          # unknown chip: keep compiler default


def _pick_batch_tile(B, L, kind):
    # Per-layer weights are re-streamed from HBM once per batch tile, so the
    # matmul M-dim (bt*L) must sit above the HBM ridge point:
    # v6e -> ~1024, v5e -> ~512, v7x -> ~512 but keep >=2 tiles for its 2 TCs.
    if "v7" in kind:
        target_m, min_tiles = 512, 2
    elif "v6" in kind:
        target_m, min_tiles = 1024, 1
    else:
        target_m, min_tiles = 512, 1
    bt = max(1, min(B, target_m // max(L, 1)))
    if min_tiles > 1 and B >= min_tiles:
        bt = max(1, min(bt, B // min_tiles))
    while B % bt:
        bt -= 1
    return bt


def _layernorm(x, g, b):
    # x: (M, W) f32, g/b: (1, W) f32
    mu = jnp.mean(x, axis=-1, keepdims=True)
    var = jnp.mean((x - mu) ** 2, axis=-1, keepdims=True)
    return (x - mu) * jax.lax.rsqrt(var + EPS) * g + b


# ---------------------------------------------------------------------------
# Fused TextTransformer kernel
#   grid = (B // bt, n_layers); the residual stream is carried in the xn
#   output block (VMEM-resident across the layer axis); per-layer weights are
#   streamed by BlockSpec.
# ---------------------------------------------------------------------------
def text_transformer_kernel(x_ref,
                            ln1_g_ref, ln1_b_ref, wqkv_ref, bqkv_ref,
                            wo_ref, bo_ref, ln2_g_ref, ln2_b_ref,
                            wfc_ref, bfc_ref, wpr_ref, bpr_ref,
                            lnf_g_ref, lnf_b_ref,
                            *rest, num_heads, with_projection):
    if with_projection:
        proj_ref, xn_ref, xp_ref = rest
    else:
        (xn_ref,) = rest
        proj_ref = xp_ref = None

    layer = pl.program_id(1)
    n_layers = pl.num_programs(1)

    Bt, L, W = xn_ref.shape
    hd = W // num_heads
    M = Bt * L

    # Load the embedded tokens into the resident output block once.
    @pl.when(layer == 0)
    def _():
        xn_ref[...] = x_ref[...]

    x2 = xn_ref[...].reshape(M, W)                       # (M, W) f32

    # --- x = x + attn(ln_1(x)) --------------------------------------------
    h = _layernorm(x2, ln1_g_ref[0], ln1_b_ref[0]).astype(jnp.bfloat16)
    # 1/sqrt(head_dim) is folded into the Q columns of wqkv/bqkv at init.
    qkv = (jnp.dot(h, wqkv_ref[0], preferred_element_type=jnp.float32)
           + bqkv_ref[0]).astype(jnp.bfloat16)           # (M, 3W) bf16
    q = qkv[:, :W].reshape(Bt, L, W)
    k = qkv[:, W:2 * W].reshape(Bt, L, W)
    v = qkv[:, 2 * W:].reshape(Bt, L, W)

    # Causal mask built in-kernel (no (L, L) DMA stream).
    row = jax.lax.broadcasted_iota(jnp.int32, (L, L), 0)
    col = jax.lax.broadcasted_iota(jnp.int32, (L, L), 1)
    neg = jnp.where(col > row, -1e30, 0.0).astype(jnp.float32)[None]  # (1,L,L)

    # Per-head attention.  Each head's output feeds its (hd, W) slice of the
    # output projection directly and is accumulated — no head-output scratch,
    # no sub-128-lane masked stores.
    acc = jnp.zeros((M, W), jnp.float32)
    for hi in range(num_heads):                          # static unroll
        sl = slice(hi * hd, (hi + 1) * hd)
        s = jnp.einsum('bqd,bkd->bqk', q[:, :, sl], k[:, :, sl],
                       preferred_element_type=jnp.float32) + neg      # (Bt,L,L)
        s = s - jnp.max(s, axis=-1, keepdims=True)
        p = jnp.exp(s)
        p = p * pl.reciprocal(jnp.sum(p, axis=-1, keepdims=True), approx=True)
        o = jnp.einsum('bqk,bkd->bqd', p.astype(jnp.bfloat16), v[:, :, sl],
                       preferred_element_type=jnp.float32)            # (Bt,L,hd)
        acc = acc + jnp.dot(o.reshape(M, hd).astype(jnp.bfloat16),
                            wo_ref[0, sl, :],
                            preferred_element_type=jnp.float32)
    x2 = x2 + acc + bo_ref[0]

    # --- x = x + mlp(ln_2(x)) ---------------------------------------------
    h2 = _layernorm(x2, ln2_g_ref[0], ln2_b_ref[0]).astype(jnp.bfloat16)
    hfc = jnp.dot(h2, wfc_ref[0],
                  preferred_element_type=jnp.float32) + bfc_ref[0]    # (M, 4W)
    # QuickGELU: sigmoid kept in f32 (v5e has no bf16 VPU), result stored bf16
    # straight into the second matmul.
    hg = (hfc * jax.nn.sigmoid(1.702 * hfc)).astype(jnp.bfloat16)
    mlp = jnp.dot(hg, wpr_ref[0],
                  preferred_element_type=jnp.float32) + bpr_ref[0]
    x2 = x2 + mlp

    @pl.when(layer != n_layers - 1)
    def _():
        xn_ref[...] = x2.reshape(Bt, L, W)

    # --- final LayerNorm (+ optional text projection) fused into last layer -
    @pl.when(layer == n_layers - 1)
    def _():
        xn = _layernorm(x2, lnf_g_ref[...], lnf_b_ref[...])
        xn_ref[...] = xn.reshape(Bt, L, W)
        if with_projection:
            E = xp_ref.shape[-1]
            xp = jnp.dot(xn.astype(jnp.bfloat16), proj_ref[...],
                         preferred_element_type=jnp.float32)
            xp_ref[...] = xp.reshape(Bt, L, E)


def text_transformer_forward(tokens, params, num_heads, batch_tile=None,
                             with_projection=False):
    # Token-embedding gather + positional add = glue (plain JAX).
    x = params['token_embedding'][tokens] + params['positional_embedding'][None]
    x = x.astype(jnp.float32)
    B, L, W = x.shape
    n_layers = params['wqkv'].shape[0]
    kind = _device_kind()

    bt = batch_tile if batch_tile is not None else _pick_batch_tile(B, L, kind)
    assert B % bt == 0

    def per_layer(a, b):
        # stacked per-layer param of shape (n_layers, a, b)
        return pl.BlockSpec((1, a, b), lambda bi, l: (l, 0, 0))

    def shared2(shape):
        return pl.BlockSpec(shape, lambda bi, l: (0, 0))

    in_specs = [
        pl.BlockSpec((bt, L, W), lambda bi, l: (bi, 0, 0)),            # x
        per_layer(1, W), per_layer(1, W),                              # ln_1 g/b
        per_layer(W, 3 * W), per_layer(1, 3 * W),                      # in_proj
        per_layer(W, W), per_layer(1, W),                              # out_proj
        per_layer(1, W), per_layer(1, W),                              # ln_2 g/b
        per_layer(W, 4 * W), per_layer(1, 4 * W),                      # c_fc
        per_layer(4 * W, W), per_layer(1, W),                          # c_proj
        shared2((1, W)), shared2((1, W)),                              # ln_final
    ]
    args = [x,
            params['ln1_g'], params['ln1_b'],
            params['wqkv'], params['bqkv'],
            params['wo'], params['bo'],
            params['ln2_g'], params['ln2_b'],
            params['wfc'], params['bfc'],
            params['wpr'], params['bpr'],
            params['ln_final_g'], params['ln_final_b']]

    xn_spec = pl.BlockSpec((bt, L, W), lambda bi, l: (bi, 0, 0))
    xn_shape = jax.ShapeDtypeStruct((B, L, W), jnp.float32)

    if with_projection:
        E = params['text_projection'].shape[1]
        in_specs.append(shared2((W, E)))
        args.append(params['text_projection'])
        out_shape = (xn_shape, jax.ShapeDtypeStruct((B, L, E), jnp.float32))
        out_specs = (xn_spec, pl.BlockSpec((bt, L, E), lambda bi, l: (bi, 0, 0)))
    else:
        out_shape = xn_shape
        out_specs = xn_spec

    kernel = functools.partial(text_transformer_kernel, num_heads=num_heads,
                               with_projection=with_projection)
    return pl.pallas_call(
        kernel,
        out_shape=out_shape,
        grid=(B // bt, n_layers),
        in_specs=in_specs,
        out_specs=out_specs,
        compiler_params=pltpu.CompilerParams(
            dimension_semantics=("parallel", "arbitrary"),
            vmem_limit_bytes=_vmem_limit_bytes(kind)),
    )(*args)


# ---------------------------------------------------------------------------
# CLIP head kernel: normalize (dim=1), mean over seq, scaled similarity logits
# Small relative to the transformer; whole-array VMEM residency is fine here.
# ---------------------------------------------------------------------------
def clip_head_kernel(ls_ref, img_ref, bbox_ref, rad_ref, clin_ref,
                     lb_ref, lr_ref, lc_ref,
                     fi_ref, fb_ref, fr_ref, fc_ref):
    scale = ls_ref[0]         # exp(logit_scale), computed in the wrapper
    img = img_ref[...]        # (B, Li, D)
    bbox = bbox_ref[...]      # (B, Lb, D)
    rad = rad_ref[...]        # (Br, D)
    clin = clin_ref[...]      # (Bc, D)

    # .norm(dim=1, keepdim=True): seq dim for 3-D, feature dim for 2-D —
    # kept as in the reference (no epsilon, matching torch).
    img_n = img * jax.lax.rsqrt(jnp.sum(img * img, axis=1, keepdims=True))
    bbox_n = bbox * jax.lax.rsqrt(jnp.sum(bbox * bbox, axis=1, keepdims=True))
    rad_n = rad * jax.lax.rsqrt(jnp.sum(rad * rad, axis=1, keepdims=True))
    clin_n = clin * jax.lax.rsqrt(jnp.sum(clin * clin, axis=1, keepdims=True))

    img_f = jnp.mean(img_n, axis=1)    # (B, D)
    bbox_f = jnp.mean(bbox_n, axis=1)  # (B, D)

    lb_ref[...] = scale * jnp.einsum('bd,cd->bc', img_f, bbox_f,
                                     preferred_element_type=jnp.float32)
    lr_ref[...] = scale * jnp.einsum('bd,cd->bc', img_f, rad_n,
                                     preferred_element_type=jnp.float32)
    lc_ref[...] = scale * jnp.einsum('bd,cd->bc', img_f, clin_n,
                                     preferred_element_type=jnp.float32)
    fi_ref[...] = img_f
    fb_ref[...] = bbox_f
    fr_ref[...] = rad_n
    fc_ref[...] = clin_n


def clip_head(image_feats, bbox_feats, rad_feats, clin_feats, logit_scale):
    B, _, D = image_feats.shape
    Bb = bbox_feats.shape[0]
    Br = rad_feats.shape[0]
    Bc = clin_feats.shape[0]
    # exp() done once in the wrapper (scalar), passed through SMEM.
    ls = jnp.exp(jnp.reshape(logit_scale, (1,)).astype(jnp.float32))
    vmem = pl.BlockSpec(memory_space=pltpu.MemorySpace.VMEM)
    return pl.pallas_call(
        clip_head_kernel,
        out_shape=(
            jax.ShapeDtypeStruct((B, Bb), jnp.float32),
            jax.ShapeDtypeStruct((B, Br), jnp.float32),
            jax.ShapeDtypeStruct((B, Bc), jnp.float32),
            jax.ShapeDtypeStruct((B, D), jnp.float32),
            jax.ShapeDtypeStruct((Bb, D), jnp.float32),
            jax.ShapeDtypeStruct((Br, D), jnp.float32),
            jax.ShapeDtypeStruct((Bc, D), jnp.float32),
        ),
        in_specs=[pl.BlockSpec(memory_space=pltpu.MemorySpace.SMEM),
                  vmem, vmem, vmem, vmem],
    )(ls, image_feats, bbox_feats, rad_feats, clin_feats)


# ---------------------------------------------------------------------------
# deterministic parameter init (matches TextTransformer.initialize_parameters)
# weights are stored pre-transposed (x @ W layout) and cast to bfloat16; the
# 1/sqrt(head_dim) attention scale is folded into the Q projection.
# ---------------------------------------------------------------------------
def init_text_params(key, vocab, L, W, E, layers, heads):
    ks = jax.random.split(key, 3 + layers)
    attn_std = W ** -0.5
    proj_std = (W ** -0.5) * ((2 * layers) ** -0.5)
    fc_std = (2 * W) ** -0.5
    q_scale = (W // heads) ** -0.5

    wqkv, wo, wfc, wpr = [], [], [], []
    for li in range(layers):
        bk = jax.random.split(ks[3 + li], 4)
        w_in = attn_std * jax.random.normal(bk[0], (W, 3 * W), jnp.float32)
        w_in = w_in.at[:, :W].multiply(q_scale)          # fold attention scale
        wqkv.append(w_in)
        wo.append(proj_std * jax.random.normal(bk[1], (W, W), jnp.float32))
        wfc.append(fc_std * jax.random.normal(bk[2], (W, 4 * W), jnp.float32))
        wpr.append(proj_std * jax.random.normal(bk[3], (4 * W, W), jnp.float32))

    return {
        'token_embedding': 0.02 * jax.random.normal(ks[0], (vocab, W), jnp.float32),
        'positional_embedding': 0.01 * jax.random.normal(ks[1], (L, W), jnp.float32),
        'ln1_g': jnp.ones((layers, 1, W), jnp.float32),
        'ln1_b': jnp.zeros((layers, 1, W), jnp.float32),
        'wqkv': jnp.stack(wqkv).astype(jnp.bfloat16),        # (NL, W, 3W)
        'bqkv': jnp.zeros((layers, 1, 3 * W), jnp.float32),  # (q-bias scale folded too if nonzero)
        'wo': jnp.stack(wo).astype(jnp.bfloat16),            # (NL, W, W)
        'bo': jnp.zeros((layers, 1, W), jnp.float32),
        'ln2_g': jnp.ones((layers, 1, W), jnp.float32),
        'ln2_b': jnp.zeros((layers, 1, W), jnp.float32),
        'wfc': jnp.stack(wfc).astype(jnp.bfloat16),          # (NL, W, 4W)
        'bfc': jnp.zeros((layers, 1, 4 * W), jnp.float32),
        'wpr': jnp.stack(wpr).astype(jnp.bfloat16),          # (NL, 4W, W)
        'bpr': jnp.zeros((layers, 1, W), jnp.float32),
        'ln_final_g': jnp.ones((1, W), jnp.float32),
        'ln_final_b': jnp.zeros((1, W), jnp.float32),
        'text_projection': (attn_std *
                            jax.random.normal(ks[2], (W, E), jnp.float32)
                            ).astype(jnp.bfloat16),
    }


# ---------------------------------------------------------------------------
# CLIP forward
# ---------------------------------------------------------------------------
def clip_forward(data, text_params, logit_scale, num_heads):
    # TODO(synk): ViT (encode_image), encode_radiomics and encode_clinical are
    # not defined in the reference source; their output features are taken
    # directly from `data` instead of being recomputed.
    image_features = data['image_features']           # (B, Li, D)
    # CLIP.forward only consumes ln_final(x) from the text encoder, so the
    # text_projection matmul + (B, L, E) writeback are skipped (dead work).
    bbox_features = text_transformer_forward(data['bbox'], text_params,
                                             num_heads, with_projection=False)
    radiomics_features = data['radiomics_features']   # (Br, D)
    clinical_features = data['clinical_features']     # (Bc, D)

    lb, lr, lc, fi, fb, fr, fc = clip_head(
        image_features, bbox_features, radiomics_features, clinical_features,
        logit_scale)
    cosine_similarity = [lb, lr, lc]
    feats = [fi, fb, fr, fc]
    return cosine_similarity, feats


if __name__ == "__main__":
    # small config consistent with CLIP(embed_dim, hidden_size, ...,
    # context_length, heads, layers)
    B = 2                 # batch
    L = 8                 # context_length
    Li = 5                # image token count (ViT output length, external)
    W = 32                # hidden_size / transformer_width
    E = 16                # embed_dim
    H = 4                 # transformer_heads
    NLAYERS = 2           # transformer_layers
    VOCAB = 64            # vocab_size (1024 in original; small here)

    key = jax.random.PRNGKey(0)
    kp, kt, ki, kr, kc = jax.random.split(key, 5)

    text_params = init_text_params(kp, VOCAB, L, W, E, NLAYERS, H)
    logit_scale = jnp.asarray(math.log(1.0 / 0.07), jnp.float32)

    data = {
        'bbox': jax.random.randint(kt, (B, L), 0, VOCAB),
        'image_features': jax.random.normal(ki, (B, Li, W), jnp.float32),
        'radiomics_features': jax.random.normal(kr, (B, W), jnp.float32),
        'clinical_features': jax.random.normal(kc, (B, W), jnp.float32),
    }

    cosine_similarity, feats = clip_forward(data, text_params, logit_scale, H)
    jax.block_until_ready(cosine_similarity)
    jax.block_until_ready(feats)

    ok = all(bool(jnp.all(jnp.isfinite(t))) for t in cosine_similarity + feats)
    assert ok, "non-finite values in outputs"
    print("KERNEL_OK")
</pallas_src>

<mosaic_0001>
module attributes {stable_mosaic.version = 11 : i64} {
  func.func @text_transformer_kernel(%arg0: i32, %arg1: i32, %arg2: memref<2x8x32xf32, #tpu.memory_space<vmem>>, %arg3: memref<1x1x32xf32, #tpu.memory_space<vmem>>, %arg4: memref<1x1x32xf32, #tpu.memory_space<vmem>>, %arg5: memref<1x32x96xbf16, #tpu.memory_space<vmem>>, %arg6: memref<1x1x96xf32, #tpu.memory_space<vmem>>, %arg7: memref<1x32x32xbf16, #tpu.memory_space<vmem>>, %arg8: memref<1x1x32xf32, #tpu.memory_space<vmem>>, %arg9: memref<1x1x32xf32, #tpu.memory_space<vmem>>, %arg10: memref<1x1x32xf32, #tpu.memory_space<vmem>>, %arg11: memref<1x32x128xbf16, #tpu.memory_space<vmem>>, %arg12: memref<1x1x128xf32, #tpu.memory_space<vmem>>, %arg13: memref<1x128x32xbf16, #tpu.memory_space<vmem>>, %arg14: memref<1x1x32xf32, #tpu.memory_space<vmem>>, %arg15: memref<1x32xf32, #tpu.memory_space<vmem>>, %arg16: memref<1x32xf32, #tpu.memory_space<vmem>>, %arg17: memref<2x8x32xf32, #tpu.memory_space<vmem>>) attributes {dimension_semantics = [#tpu.dimension_semantics<parallel>, #tpu.dimension_semantics<arbitrary>], iteration_bounds = array<i64: 1, 2>, scalar_prefetch = 0 : i64, scratch_operands = 0 : i64, tpu.core_type = #tpu.core_type<tc>, window_params = [{transform_indices = @transform_0, window_bounds = array<i64: 2, 8, 32>}, {transform_indices = @transform_1, window_bounds = array<i64: 1, 1, 32>}, {transform_indices = @transform_2, window_bounds = array<i64: 1, 1, 32>}, {transform_indices = @transform_3, window_bounds = array<i64: 1, 32, 96>}, {transform_indices = @transform_4, window_bounds = array<i64: 1, 1, 96>}, {transform_indices = @transform_5, window_bounds = array<i64: 1, 32, 32>}, {transform_indices = @transform_6, window_bounds = array<i64: 1, 1, 32>}, {transform_indices = @transform_7, window_bounds = array<i64: 1, 1, 32>}, {transform_indices = @transform_8, window_bounds = array<i64: 1, 1, 32>}, {transform_indices = @transform_9, window_bounds = array<i64: 1, 32, 128>}, {transform_indices = @transform_10, window_bounds = array<i64: 1, 1, 128>}, {transform_indices = @transform_11, window_bounds = array<i64: 1, 128, 32>}, {transform_indices = @transform_12, window_bounds = array<i64: 1, 1, 32>}, {pipeline_mode = #tpu.pipeline_mode<synchronous>, transform_indices = @transform_13, window_bounds = array<i64: 1, 32>}, {pipeline_mode = #tpu.pipeline_mode<synchronous>, transform_indices = @transform_14, window_bounds = array<i64: 1, 32>}, {transform_indices = @transform_15, window_bounds = array<i64: 2, 8, 32>}]} {
    %c0_i32 = arith.constant 0 : i32
    %0 = arith.cmpi eq, %arg1, %c0_i32 : i32
    %1 = arith.extui %0 : i1 to i32
    %c0_i32_0 = arith.constant 0 : i32
    %2 = arith.cmpi ne, %1, %c0_i32_0 : i32
    scf.if %2 {
      %c0_85 = arith.constant 0 : index
      %c0_86 = arith.constant 0 : index
      %c0_87 = arith.constant 0 : index
      %212 = vector.load %arg2[%c0_85, %c0_86, %c0_87] : memref<2x8x32xf32, #tpu.memory_space<vmem>>, vector<2x8x32xf32>
      %c0_88 = arith.constant 0 : index
      %c0_89 = arith.constant 0 : index
      %c0_90 = arith.constant 0 : index
      %213 = vector.load %arg17[%c0_88, %c0_89, %c0_90] : memref<2x8x32xf32, #tpu.memory_space<vmem>>, vector<2x8x32xf32>
      tpu.vector_store %arg17[%c0_88, %c0_89, %c0_90], %212 {strides = array<i32>} : memref<2x8x32xf32, #tpu.memory_space<vmem>>, vector<2x8x32xf32>,
    } else {
    }
    %c0 = arith.constant 0 : index
    %c0_1 = arith.constant 0 : index
    %c0_2 = arith.constant 0 : index
    %3 = vector.load %arg17[%c0, %c0_1, %c0_2] : memref<2x8x32xf32, #tpu.memory_space<vmem>>, vector<2x8x32xf32>
    %4 = vector.shape_cast %3 : vector<2x8x32xf32> to vector<16x32xf32>
    %c0_3 = arith.constant 0 : index
    %c0_4 = arith.constant 0 : index
    %c0_5 = arith.constant 0 : index
    %5 = vector.load %arg3[%c0_3, %c0_4, %c0_5] : memref<1x1x32xf32, #tpu.memory_space<vmem>>, vector<1x1x32xf32>
    %6 = vector.shape_cast %5 : vector<1x1x32xf32> to vector<1x32xf32>
    %c0_6 = arith.constant 0 : index
    %c0_7 = arith.constant 0 : index
    %c0_8 = arith.constant 0 : index
    %7 = vector.load %arg4[%c0_6, %c0_7, %c0_8] : memref<1x1x32xf32, #tpu.memory_space<vmem>>, vector<1x1x32xf32>
    %8 = vector.shape_cast %7 : vector<1x1x32xf32> to vector<1x32xf32>
    %cst = arith.constant dense<0.000000e+00> : vector<16xf32>
    %9 = vector.multi_reduction <add>, %4, %cst [1] : vector<16x32xf32> to vector<16xf32>
    %10 = vector.shape_cast %9 : vector<16xf32> to vector<16x1xf32>
    %cst_9 = arith.constant 3.200000e+01 : f32
    %11 = vector.broadcast %cst_9 : f32 to vector<16x1xf32>
    %12 = arith.divf %10, %11 : vector<16x1xf32>
    %13 = vector.broadcast %12 : vector<16x1xf32> to vector<16x32xf32>
    %14 = arith.subf %4, %13 : vector<16x32xf32>
    %15 = arith.mulf %14, %14 : vector<16x32xf32>
    %cst_10 = arith.constant dense<0.000000e+00> : vector<16xf32>
    %16 = vector.multi_reduction <add>, %15, %cst_10 [1] : vector<16x32xf32> to vector<16xf32>
    %17 = vector.shape_cast %16 : vector<16xf32> to vector<16x1xf32>
    %cst_11 = arith.constant 3.200000e+01 : f32
    %18 = vector.broadcast %cst_11 : f32 to vector<16x1xf32>
    %19 = arith.divf %17, %18 : vector<16x1xf32>
    %20 = vector.broadcast %12 : vector<16x1xf32> to vector<16x32xf32>
    %21 = arith.subf %4, %20 : vector<16x32xf32>
    %cst_12 = arith.constant 9.99999974E-6 : f32
    %22 = vector.broadcast %cst_12 : f32 to vector<16x1xf32>
    %23 = arith.addf %19, %22 : vector<16x1xf32>
    %24 = math.rsqrt %23 : vector<16x1xf32>
    %25 = vector.broadcast %24 : vector<16x1xf32> to vector<16x32xf32>
    %26 = arith.mulf %21, %25 : vector<16x32xf32>
    %27 = vector.broadcast %6 : vector<1x32xf32> to vector<16x32xf32>
    %28 = arith.mulf %26, %27 : vector<16x32xf32>
    %29 = vector.broadcast %8 : vector<1x32xf32> to vector<16x32xf32>
    %30 = arith.addf %28, %29 : vector<16x32xf32>
    %31 = arith.truncf %30 : vector<16x32xf32> to vector<16x32xbf16>
    %c0_13 = arith.constant 0 : index
    %c0_14 = arith.constant 0 : index
    %c0_15 = arith.constant 0 : index
    %32 = vector.load %arg5[%c0_13, %c0_14, %c0_15] : memref<1x32x96xbf16, #tpu.memory_space<vmem>>, vector<1x32x96xbf16>
    %33 = vector.shape_cast %32 : vector<1x32x96xbf16> to vector<32x96xbf16>
    %cst_16 = arith.constant dense<0.000000e+00> : vector<16x96xf32>
    %34 = tpu.matmul %31, %33, %cst_16 {dimension_numbers = #tpu.dot_dimension_numbers<[1], [0], [0], [1], [0, 0, 1, 1], [], []>} : vector<16x32xbf16>, vector<32x96xbf16>, vector<16x96xf32> -> vector<16x96xf32>
    %c0_17 = arith.constant 0 : index
    %c0_18 = arith.constant 0 : index
    %c0_19 = arith.constant 0 : index
    %35 = vector.load %arg6[%c0_17, %c0_18, %c0_19] : memref<1x1x96xf32, #tpu.memory_space<vmem>>, vector<1x1x96xf32>
    %36 = vector.shape_cast %35 : vector<1x1x96xf32> to vector<1x96xf32>
    %37 = vector.broadcast %36 : vector<1x96xf32> to vector<16x96xf32>
    %38 = arith.addf %34, %37 : vector<16x96xf32>
    %39 = arith.truncf %38 : vector<16x96xf32> to vector<16x96xbf16>
    %40 = vector.extract_strided_slice %39 {offsets = [0, 0], sizes = [16, 32], strides = [1, 1]} : vector<16x96xbf16> to vector<16x32xbf16>
    %41 = vector.shape_cast %40 : vector<16x32xbf16> to vector<2x8x32xbf16>
    %42 = vector.extract_strided_slice %39 {offsets = [0, 32], sizes = [16, 32], strides = [1, 1]} : vector<16x96xbf16> to vector<16x32xbf16>
    %43 = vector.shape_cast %42 : vector<16x32xbf16> to vector<2x8x32xbf16>
    %44 = vector.extract_strided_slice %39 {offsets = [0, 64], sizes = [16, 32], strides = [1, 1]} : vector<16x96xbf16> to vector<16x32xbf16>
    %45 = vector.shape_cast %44 : vector<16x32xbf16> to vector<2x8x32xbf16>
    %46 = tpu.iota {dimensions = array<i32: 0>} : vector<8x8xi32>
    %47 = tpu.iota {dimensions = array<i32: 1>} : vector<8x8xi32>
    %48 = arith.cmpi sgt, %47, %46 : vector<8x8xi32>
    %cst_20 = arith.constant -1.000000e+30 : f32
    %cst_21 = arith.constant 0.000000e+00 : f32
    %49 = vector.broadcast %cst_20 : f32 to vector<8x8xf32>
    %50 = vector.broadcast %cst_21 : f32 to vector<8x8xf32>
    %51 = arith.select %48, %49, %50 : vector<8x8xi1>, vector<8x8xf32>
    %52 = vector.shape_cast %51 : vector<8x8xf32> to vector<1x8x8xf32>
    %cst_22 = arith.constant 0.000000e+00 : f32
    %53 = vector.broadcast %cst_22 : f32 to vector<16x32xf32>
    %54 = vector.extract_strided_slice %41 {offsets = [0, 0, 0], sizes = [2, 8, 8], strides = [1, 1, 1]} : vector<2x8x32xbf16> to vector<2x8x8xbf16>
    %55 = vector.extract_strided_slice %43 {offsets = [0, 0, 0], sizes = [2, 8, 8], strides = [1, 1, 1]} : vector<2x8x32xbf16> to vector<2x8x8xbf16>
    "tpu.trace_start"() <{level = 10 : i32, message = "bqd,bkd->bqk"}> : () -> ()
    %cst_23 = arith.constant dense<0.000000e+00> : vector<2x8x8xf32>
    %56 = tpu.matmul %54, %55, %cst_23 {dimension_numbers = #tpu.dot_dimension_numbers<[2], [2], [1], [1], [0, 0, 0, 1, 1, 1], [0], [0]>} : vector<2x8x8xbf16>, vector<2x8x8xbf16>, vector<2x8x8xf32> -> vector<2x8x8xf32>
    "tpu.trace_stop"() : () -> ()
    %57 = vector.broadcast %52 : vector<1x8x8xf32> to vector<2x8x8xf32>
    %58 = arith.addf %56, %57 : vector<2x8x8xf32>
    %cst_24 = arith.constant dense<0xFF800000> : vector<2x8xf32>
    %59 = vector.multi_reduction <maximumf>, %58, %cst_24 [2] : vector<2x8x8xf32> to vector<2x8xf32>
    %60 = vector.shape_cast %59 : vector<2x8xf32> to vector<2x8x1xf32>
    %61 = vector.broadcast %60 : vector<2x8x1xf32> to vector<2x8x8xf32>
    %62 = arith.subf %58, %61 : vector<2x8x8xf32>
    %63 = math.exp %62 : vector<2x8x8xf32>
    %cst_25 = arith.constant dense<0.000000e+00> : vector<2x8xf32>
    %64 = vector.multi_reduction <add>, %63, %cst_25 [2] : vector<2x8x8xf32> to vector<2x8xf32>
    %65 = vector.shape_cast %64 : vector<2x8xf32> to vector<2x8x1xf32>
    %66 = tpu.reciprocal %65 {approx = true} : vector<2x8x1xf32> -> vector<2x8x1xf32>
    %67 = vector.broadcast %66 : vector<2x8x1xf32> to vector<2x8x8xf32>
    %68 = arith.mulf %63, %67 : vector<2x8x8xf32>
    %69 = arith.truncf %68 : vector<2x8x8xf32> to vector<2x8x8xbf16>
    %70 = vector.extract_strided_slice %45 {offsets = [0, 0, 0], sizes = [2, 8, 8], strides = [1, 1, 1]} : vector<2x8x32xbf16> to vector<2x8x8xbf16>
    "tpu.trace_start"() <{level = 10 : i32, message = "bqk,bkd->bqd"}> : () -> ()
    %cst_26 = arith.constant dense<0.000000e+00> : vector<2x8x8xf32>
    %71 = tpu.matmul %69, %70, %cst_26 {dimension_numbers = #tpu.dot_dimension_numbers<[2], [1], [1], [2], [0, 0, 0, 1, 1, 2], [0], [0]>} : vector<2x8x8xbf16>, vector<2x8x8xbf16>, vector<2x8x8xf32> -> vector<2x8x8xf32>
    "tpu.trace_stop"() : () -> ()
    %72 = vector.shape_cast %71 : vector<2x8x8xf32> to vector<16x8xf32>
    %73 = arith.truncf %72 : vector<16x8xf32> to vector<16x8xbf16>
    %c0_27 = arith.constant 0 : index
    %c0_28 = arith.constant 0 : index
    %c0_29 = arith.constant 0 : index
    %74 = vector.load %arg7[%c0_27, %c0_28, %c0_29] : memref<1x32x32xbf16, #tpu.memory_space<vmem>>, vector<1x8x32xbf16>
    %75 = vector.shape_cast %74 : vector<1x8x32xbf16> to vector<8x32xbf16>
    %cst_30 = arith.constant dense<0.000000e+00> : vector<16x32xf32>
    %76 = tpu.matmul %73, %75, %cst_30 {dimension_numbers = #tpu.dot_dimension_numbers<[1], [0], [0], [1], [0, 0, 1, 1], [], []>} : vector<16x8xbf16>, vector<8x32xbf16>, vector<16x32xf32> -> vector<16x32xf32>
    %77 = arith.addf %53, %76 : vector<16x32xf32>
    %78 = vector.extract_strided_slice %41 {offsets = [0, 0, 8], sizes = [2, 8, 8], strides = [1, 1, 1]} : vector<2x8x32xbf16> to vector<2x8x8xbf16>
    %79 = vector.extract_strided_slice %43 {offsets = [0, 0, 8], sizes = [2, 8, 8], strides = [1, 1, 1]} : vector<2x8x32xbf16> to vector<2x8x8xbf16>
    "tpu.trace_start"() <{level = 10 : i32, message = "bqd,bkd->bqk"}> : () -> ()
    %cst_31 = arith.constant dense<0.000000e+00> : vector<2x8x8xf32>
    %80 = tpu.matmul %78, %79, %cst_31 {dimension_numbers = #tpu.dot_dimension_numbers<[2], [2], [1], [1], [0, 0, 0, 1, 1, 1], [0], [0]>} : vector<2x8x8xbf16>, vector<2x8x8xbf16>, vector<2x8x8xf32> -> vector<2x8x8xf32>
    "tpu.trace_stop"() : () -> ()
    %81 = vector.broadcast %52 : vector<1x8x8xf32> to vector<2x8x8xf32>
    %82 = arith.addf %80, %81 : vector<2x8x8xf32>
    %cst_32 = arith.constant dense<0xFF800000> : vector<2x8xf32>
    %83 = vector.multi_reduction <maximumf>, %82, %cst_32 [2] : vector<2x8x8xf32> to vector<2x8xf32>
    %84 = vector.shape_cast %83 : vector<2x8xf32> to vector<2x8x1xf32>
    %85 = vector.broadcast %84 : vector<2x8x1xf32> to vector<2x8x8xf32>
    %86 = arith.subf %82, %85 : vector<2x8x8xf32>
    %87 = math.exp %86 : vector<2x8x8xf32>
    %cst_33 = arith.constant dense<0.000000e+00> : vector<2x8xf32>
    %88 = vector.multi_reduction <add>, %87, %cst_33 [2] : vector<2x8x8xf32> to vector<2x8xf32>
    %89 = vector.shape_cast %88 : vector<2x8xf32> to vector<2x8x1xf32>
    %90 = tpu.reciprocal %89 {approx = true} : vector<2x8x1xf32> -> vector<2x8x1xf32>
    %91 = vector.broadcast %90 : vector<2x8x1xf32> to vector<2x8x8xf32>
    %92 = arith.mulf %87, %91 : vector<2x8x8xf32>
    %93 = arith.truncf %92 : vector<2x8x8xf32> to vector<2x8x8xbf16>
    %94 = vector.extract_strided_slice %45 {offsets = [0, 0, 8], sizes = [2, 8, 8], strides = [1, 1, 1]} : vector<2x8x32xbf16> to vector<2x8x8xbf16>
    "tpu.trace_start"() <{level = 10 : i32, message = "bqk,bkd->bqd"}> : () -> ()
    %cst_34 = arith.constant dense<0.000000e+00> : vector<2x8x8xf32>
    %95 = tpu.matmul %93, %94, %cst_34 {dimension_numbers = #tpu.dot_dimension_numbers<[2], [1], [1], [2], [0, 0, 0, 1, 1, 2], [0], [0]>} : vector<2x8x8xbf16>, vector<2x8x8xbf16>, vector<2x8x8xf32> -> vector<2x8x8xf32>
    "tpu.trace_stop"() : () -> ()
    %96 = vector.shape_cast %95 : vector<2x8x8xf32> to vector<16x8xf32>
    %97 = arith.truncf %96 : vector<16x8xf32> to vector<16x8xbf16>
    %c0_35 = arith.constant 0 : index
    %c8 = arith.constant 8 : index
    %c0_36 = arith.constant 0 : index
    %98 = vector.load %arg7[%c0_35, %c8, %c0_36] : memref<1x32x32xbf16, #tpu.memory_space<vmem>>, vector<1x8x32xbf16>
    %99 = vector.shape_cast %98 : vector<1x8x32xbf16> to vector<8x32xbf16>
    %cst_37 = arith.constant dense<0.000000e+00> : vector<16x32xf32>
    %100 = tpu.matmul %97, %99, %cst_37 {dimension_numbers = #tpu.dot_dimension_numbers<[1], [0], [0], [1], [0, 0, 1, 1], [], []>} : vector<16x8xbf16>, vector<8x32xbf16>, vector<16x32xf32> -> vector<16x32xf32>
    %101 = arith.addf %77, %100 : vector<16x32xf32>
    %102 = vector.extract_strided_slice %41 {offsets = [0, 0, 16], sizes = [2, 8, 8], strides = [1, 1, 1]} : vector<2x8x32xbf16> to vector<2x8x8xbf16>
    %103 = vector.extract_strided_slice %43 {offsets = [0, 0, 16], sizes = [2, 8, 8], strides = [1, 1, 1]} : vector<2x8x32xbf16> to vector<2x8x8xbf16>
    "tpu.trace_start"() <{level = 10 : i32, message = "bqd,bkd->bqk"}> : () -> ()
    %cst_38 = arith.constant dense<0.000000e+00> : vector<2x8x8xf32>
    %104 = tpu.matmul %102, %103, %cst_38 {dimension_numbers = #tpu.dot_dimension_numbers<[2], [2], [1], [1], [0, 0, 0, 1, 1, 1], [0], [0]>} : vector<2x8x8xbf16>, vector<2x8x8xbf16>, vector<2x8x8xf32> -> vector<2x8x8xf32>
    "tpu.trace_stop"() : () -> ()
    %105 = vector.broadcast %52 : vector<1x8x8xf32> to vector<2x8x8xf32>
    %106 = arith.addf %104, %105 : vector<2x8x8xf32>
    %cst_39 = arith.constant dense<0xFF800000> : vector<2x8xf32>
    %107 = vector.multi_reduction <maximumf>, %106, %cst_39 [2] : vector<2x8x8xf32> to vector<2x8xf32>
    %108 = vector.shape_cast %107 : vector<2x8xf32> to vector<2x8x1xf32>
    %109 = vector.broadcast %108 : vector<2x8x1xf32> to vector<2x8x8xf32>
    %110 = arith.subf %106, %109 : vector<2x8x8xf32>
    %111 = math.exp %110 : vector<2x8x8xf32>
    %cst_40 = arith.constant dense<0.000000e+00> : vector<2x8xf32>
    %112 = vector.multi_reduction <add>, %111, %cst_40 [2] : vector<2x8x8xf32> to vector<2x8xf32>
    %113 = vector.shape_cast %112 : vector<2x8xf32> to vector<2x8x1xf32>
    %114 = tpu.reciprocal %113 {approx = true} : vector<2x8x1xf32> -> vector<2x8x1xf32>
    %115 = vector.broadcast %114 : vector<2x8x1xf32> to vector<2x8x8xf32>
    %116 = arith.mulf %111, %115 : vector<2x8x8xf32>
    %117 = arith.truncf %116 : vector<2x8x8xf32> to vector<2x8x8xbf16>
    %118 = vector.extract_strided_slice %45 {offsets = [0, 0, 16], sizes = [2, 8, 8], strides = [1, 1, 1]} : vector<2x8x32xbf16> to vector<2x8x8xbf16>
    "tpu.trace_start"() <{level = 10 : i32, message = "bqk,bkd->bqd"}> : () -> ()
    %cst_41 = arith.constant dense<0.000000e+00> : vector<2x8x8xf32>
    %119 = tpu.matmul %117, %118, %cst_41 {dimension_numbers = #tpu.dot_dimension_numbers<[2], [1], [1], [2], [0, 0, 0, 1, 1, 2], [0], [0]>} : vector<2x8x8xbf16>, vector<2x8x8xbf16>, vector<2x8x8xf32> -> vector<2x8x8xf32>
    "tpu.trace_stop"() : () -> ()
    %120 = vector.shape_cast %119 : vector<2x8x8xf32> to vector<16x8xf32>
    %121 = arith.truncf %120 : vector<16x8xf32> to vector<16x8xbf16>
    %c0_42 = arith.constant 0 : index
    %c16 = arith.constant 16 : index
    %c0_43 = arith.constant 0 : index
    %122 = vector.load %arg7[%c0_42, %c16, %c0_43] : memref<1x32x32xbf16, #tpu.memory_space<vmem>>, vector<1x8x32xbf16>
    %123 = vector.shape_cast %122 : vector<1x8x32xbf16> to vector<8x32xbf16>
    %cst_44 = arith.constant dense<0.000000e+00> : vector<16x32xf32>
    %124 = tpu.matmul %121, %123, %cst_44 {dimension_numbers = #tpu.dot_dimension_numbers<[1], [0], [0], [1], [0, 0, 1, 1], [], []>} : vector<16x8xbf16>, vector<8x32xbf16>, vector<16x32xf32> -> vector<16x32xf32>
    %125 = arith.addf %101, %124 : vector<16x32xf32>
    %126 = vector.extract_strided_slice %41 {offsets = [0, 0, 24], sizes = [2, 8, 8], strides = [1, 1, 1]} : vector<2x8x32xbf16> to vector<2x8x8xbf16>
    %127 = vector.extract_strided_slice %43 {offsets = [0, 0, 24], sizes = [2, 8, 8], strides = [1, 1, 1]} : vector<2x8x32xbf16> to vector<2x8x8xbf16>
    "tpu.trace_start"() <{level = 10 : i32, message = "bqd,bkd->bqk"}> : () -> ()
    %cst_45 = arith.constant dense<0.000000e+00> : vector<2x8x8xf32>
    %128 = tpu.matmul %126, %127, %cst_45 {dimension_numbers = #tpu.dot_dimension_numbers<[2], [2], [1], [1], [0, 0, 0, 1, 1, 1], [0], [0]>} : vector<2x8x8xbf16>, vector<2x8x8xbf16>, vector<2x8x8xf32> -> vector<2x8x8xf32>
    "tpu.trace_stop"() : () -> ()
    %129 = vector.broadcast %52 : vector<1x8x8xf32> to vector<2x8x8xf32>
    %130 = arith.addf %128, %129 : vector<2x8x8xf32>
    %cst_46 = arith.constant dense<0xFF800000> : vector<2x8xf32>
    %131 = vector.multi_reduction <maximumf>, %130, %cst_46 [2] : vector<2x8x8xf32> to vector<2x8xf32>
    %132 = vector.shape_cast %131 : vector<2x8xf32> to vector<2x8x1xf32>
    %133 = vector.broadcast %132 : vector<2x8x1xf32> to vector<2x8x8xf32>
    %134 = arith.subf %130, %133 : vector<2x8x8xf32>
    %135 = math.exp %134 : vector<2x8x8xf32>
    %cst_47 = arith.constant dense<0.000000e+00> : vector<2x8xf32>
    %136 = vector.multi_reduction <add>, %135, %cst_47 [2] : vector<2x8x8xf32> to vector<2x8xf32>
    %137 = vector.shape_cast %136 : vector<2x8xf32> to vector<2x8x1xf32>
    %138 = tpu.reciprocal %137 {approx = true} : vector<2x8x1xf32> -> vector<2x8x1xf32>
    %139 = vector.broadcast %138 : vector<2x8x1xf32> to vector<2x8x8xf32>
    %140 = arith.mulf %135, %139 : vector<2x8x8xf32>
    %141 = arith.truncf %140 : vector<2x8x8xf32> to vector<2x8x8xbf16>
    %142 = vector.extract_strided_slice %45 {offsets = [0, 0, 24], sizes = [2, 8, 8], strides = [1, 1, 1]} : vector<2x8x32xbf16> to vector<2x8x8xbf16>
    "tpu.trace_start"() <{level = 10 : i32, message = "bqk,bkd->bqd"}> : () -> ()
    %cst_48 = arith.constant dense<0.000000e+00> : vector<2x8x8xf32>
    %143 = tpu.matmul %141, %142, %cst_48 {dimension_numbers = #tpu.dot_dimension_numbers<[2], [1], [1], [2], [0, 0, 0, 1, 1, 2], [0], [0]>} : vector<2x8x8xbf16>, vector<2x8x8xbf16>, vector<2x8x8xf32> -> vector<2x8x8xf32>
    "tpu.trace_stop"() : () -> ()
    %144 = vector.shape_cast %143 : vector<2x8x8xf32> to vector<16x8xf32>
    %145 = arith.truncf %144 : vector<16x8xf32> to vector<16x8xbf16>
    %c0_49 = arith.constant 0 : index
    %c24 = arith.constant 24 : index
    %c0_50 = arith.constant 0 : index
    %146 = vector.load %arg7[%c0_49, %c24, %c0_50] : memref<1x32x32xbf16, #tpu.memory_space<vmem>>, vector<1x8x32xbf16>
    %147 = vector.shape_cast %146 : vector<1x8x32xbf16> to vector<8x32xbf16>
    %cst_51 = arith.constant dense<0.000000e+00> : vector<16x32xf32>
    %148 = tpu.matmul %145, %147, %cst_51 {dimension_numbers = #tpu.dot_dimension_numbers<[1], [0], [0], [1], [0, 0, 1, 1], [], []>} : vector<16x8xbf16>, vector<8x32xbf16>, vector<16x32xf32> -> vector<16x32xf32>
    %149 = arith.addf %125, %148 : vector<16x32xf32>
    %150 = arith.addf %4, %149 : vector<16x32xf32>
    %c0_52 = arith.constant 0 : index
    %c0_53 = arith.constant 0 : index
    %c0_54 = arith.constant 0 : index
    %151 = vector.load %arg8[%c0_52, %c0_53, %c0_54] : memref<1x1x32xf32, #tpu.memory_space<vmem>>, vector<1x1x32xf32>
    %152 = vector.shape_cast %151 : vector<1x1x32xf32> to vector<1x32xf32>
    %153 = vector.broadcast %152 : vector<1x32xf32> to vector<16x32xf32>
    %154 = arith.addf %150, %153 : vector<16x32xf32>
    %c0_55 = arith.constant 0 : index
    %c0_56 = arith.constant 0 : index
    %c0_57 = arith.constant 0 : index
    %155 = vector.load %arg9[%c0_55, %c0_56, %c0_57] : memref<1x1x32xf32, #tpu.memory_space<vmem>>, vector<1x1x32xf32>
    %156 = vector.shape_cast %155 : vector<1x1x32xf32> to vector<1x32xf32>
    %c0_58 = arith.constant 0 : index
    %c0_59 = arith.constant 0 : index
    %c0_60 = arith.constant 0 : index
    %157 = vector.load %arg10[%c0_58, %c0_59, %c0_60] : memref<1x1x32xf32, #tpu.memory_space<vmem>>, vector<1x1x32xf32>
    %158 = vector.shape_cast %157 : vector<1x1x32xf32> to vector<1x32xf32>
    %cst_61 = arith.constant dense<0.000000e+00> : vector<16xf32>
    %159 = vector.multi_reduction <add>, %154, %cst_61 [1] : vector<16x32xf32> to vector<16xf32>
    %160 = vector.shape_cast %159 : vector<16xf32> to vector<16x1xf32>
    %cst_62 = arith.constant 3.200000e+01 : f32
    %161 = vector.broadcast %cst_62 : f32 to vector<16x1xf32>
    %162 = arith.divf %160, %161 : vector<16x1xf32>
    %163 = vector.broadcast %162 : vector<16x1xf32> to vector<16x32xf32>
    %164 = arith.subf %154, %163 : vector<16x32xf32>
    %165 = arith.mulf %164, %164 : vector<16x32xf32>
    %cst_63 = arith.constant dense<0.000000e+00> : vector<16xf32>
    %166 = vector.multi_reduction <add>, %165, %cst_63 [1] : vector<16x32xf32> to vector<16xf32>
    %167 = vector.shape_cast %166 : vector<16xf32> to vector<16x1xf32>
    %cst_64 = arith.constant 3.200000e+01 : f32
    %168 = vector.broadcast %cst_64 : f32 to vector<16x1xf32>
    %169 = arith.divf %167, %168 : vector<16x1xf32>
    %170 = vector.broadcast %162 : vector<16x1xf32> to vector<16x32xf32>
    %171 = arith.subf %154, %170 : vector<16x32xf32>
    %cst_65 = arith.constant 9.99999974E-6 : f32
    %172 = vector.broadcast %cst_65 : f32 to vector<16x1xf32>
    %173 = arith.addf %169, %172 : vector<16x1xf32>
    %174 = math.rsqrt %173 : vector<16x1xf32>
    %175 = vector.broadcast %174 : vector<16x1xf32> to vector<16x32xf32>
    %176 = arith.mulf %171, %175 : vector<16x32xf32>
    %177 = vector.broadcast %156 : vector<1x32xf32> to vector<16x32xf32>
    %178 = arith.mulf %176, %177 : vector<16x32xf32>
    %179 = vector.broadcast %158 : vector<1x32xf32> to vector<16x32xf32>
    %180 = arith.addf %178, %179 : vector<16x32xf32>
    %181 = arith.truncf %180 : vector<16x32xf32> to vector<16x32xbf16>
    %c0_66 = arith.constant 0 : index
    %c0_67 = arith.constant 0 : index
    %c0_68 = arith.constant 0 : index
    %182 = vector.load %arg11[%c0_66, %c0_67, %c0_68] : memref<1x32x128xbf16, #tpu.memory_space<vmem>>, vector<1x32x128xbf16>
    %183 = vector.shape_cast %182 : vector<1x32x128xbf16> to vector<32x128xbf16>
    %cst_69 = arith.constant dense<0.000000e+00> : vector<16x128xf32>
    %184 = tpu.matmul %181, %183, %cst_69 {dimension_numbers = #tpu.dot_dimension_numbers<[1], [0], [0], [1], [0, 0, 1, 1], [], []>} : vector<16x32xbf16>, vector<32x128xbf16>, vector<16x128xf32> -> vector<16x128xf32>
    %c0_70 = arith.constant 0 : index
    %c0_71 = arith.constant 0 : index
    %c0_72 = arith.constant 0 : index
    %185 = vector.load %arg12[%c0_70, %c0_71, %c0_72] : memref<1x1x128xf32, #tpu.memory_space<vmem>>, vector<1x1x128xf32>
    %186 = vector.shape_cast %185 : vector<1x1x128xf32> to vector<1x128xf32>
    %187 = vector.broadcast %186 : vector<1x128xf32> to vector<16x128xf32>
    %188 = arith.addf %184, %187 : vector<16x128xf32>
    %cst_73 = arith.constant 1.702000e+00 : f32
    %189 = vector.broadcast %cst_73 : f32 to vector<16x128xf32>
    %190 = arith.mulf %189, %188 : vector<16x128xf32>
    %191 = arith.negf %190 : vector<16x128xf32>
    %192 = math.exp %191 : vector<16x128xf32>
    %cst_74 = arith.constant 1.000000e+00 : f32
    %193 = vector.broadcast %cst_74 : f32 to vector<16x128xf32>
    %194 = arith.addf %193, %192 : vector<16x128xf32>
    %195 = arith.divf %193, %194 : vector<16x128xf32>
    %196 = arith.mulf %188, %195 : vector<16x128xf32>
    %197 = arith.truncf %196 : vector<16x128xf32> to vector<16x128xbf16>
    %c0_75 = arith.constant 0 : index
    %c0_76 = arith.constant 0 : index
    %c0_77 = arith.constant 0 : index
    %198 = vector.load %arg13[%c0_75, %c0_76, %c0_77] : memref<1x128x32xbf16, #tpu.memory_space<vmem>>, vector<1x128x32xbf16>
    %199 = vector.shape_cast %198 : vector<1x128x32xbf16> to vector<128x32xbf16>
    %cst_78 = arith.constant dense<0.000000e+00> : vector<16x32xf32>
    %200 = tpu.matmul %197, %199, %cst_78 {dimension_numbers = #tpu.dot_dimension_numbers<[1], [0], [0], [1], [0, 0, 1, 1], [], []>} : vector<16x128xbf16>, vector<128x32xbf16>, vector<16x32xf32> -> vector<16x32xf32>
    %c0_79 = arith.constant 0 : index
    %c0_80 = arith.constant 0 : index
    %c0_81 = arith.constant 0 : index
    %201 = vector.load %arg14[%c0_79, %c0_80, %c0_81] : memref<1x1x32xf32, #tpu.memory_space<vmem>>, vector<1x1x32xf32>
    %202 = vector.shape_cast %201 : vector<1x1x32xf32> to vector<1x32xf32>
    %203 = vector.broadcast %202 : vector<1x32xf32> to vector<16x32xf32>
    %204 = arith.addf %200, %203 : vector<16x32xf32>
    %205 = arith.addf %154, %204 : vector<16x32xf32>
    %c1_i32 = arith.constant 1 : i32
    %206 = arith.cmpi ne, %arg1, %c1_i32 : i32
    %207 = arith.extui %206 : i1 to i32
    %c0_i32_82 = arith.constant 0 : i32
    %208 = arith.cmpi ne, %207, %c0_i32_82 : i32
    scf.if %208 {
      %212 = vector.shape_cast %205 : vector<16x32xf32> to vector<2x8x32xf32>
      %c0_85 = arith.constant 0 : index
      %c0_86 = arith.constant 0 : index
      %c0_87 = arith.constant 0 : index
      %213 = vector.load %arg17[%c0_85, %c0_86, %c0_87] : memref<2x8x32xf32, #tpu.memory_space<vmem>>, vector<2x8x32xf32>
      tpu.vector_store %arg17[%c0_85, %c0_86, %c0_87], %212 {strides = array<i32>} : memref<2x8x32xf32, #tpu.memory_space<vmem>>, vector<2x8x32xf32>,
    } else {
    }
    %c1_i32_83 = arith.constant 1 : i32
    %209 = arith.cmpi eq, %arg1, %c1_i32_83 : i32
    %210 = arith.extui %209 : i1 to i32
    %c0_i32_84 = arith.constant 0 : i32
    %211 = arith.cmpi ne, %210, %c0_i32_84 : i32
    scf.if %211 {
      %c0_85 = arith.constant 0 : index
      %c0_86 = arith.constant 0 : index
      %212 = vector.load %arg15[%c0_85, %c0_86] : memref<1x32xf32, #tpu.memory_space<vmem>>, vector<1x32xf32>
      %c0_87 = arith.constant 0 : index
      %c0_88 = arith.constant 0 : index
      %213 = vector.load %arg16[%c0_87, %c0_88] : memref<1x32xf32, #tpu.memory_space<vmem>>, vector<1x32xf32>
      %cst_89 = arith.constant dense<0.000000e+00> : vector<16xf32>
      %214 = vector.multi_reduction <add>, %205, %cst_89 [1] : vector<16x32xf32> to vector<16xf32>
      %215 = vector.shape_cast %214 : vector<16xf32> to vector<16x1xf32>
      %cst_90 = arith.constant 3.200000e+01 : f32
      %216 = vector.broadcast %cst_90 : f32 to vector<16x1xf32>
      %217 = arith.divf %215, %216 : vector<16x1xf32>
      %218 = vector.broadcast %217 : vector<16x1xf32> to vector<16x32xf32>
      %219 = arith.subf %205, %218 : vector<16x32xf32>
      %220 = arith.mulf %219, %219 : vector<16x32xf32>
      %cst_91 = arith.constant dense<0.000000e+00> : vector<16xf32>
      %221 = vector.multi_reduction <add>, %220, %cst_91 [1] : vector<16x32xf32> to vector<16xf32>
      %222 = vector.shape_cast %221 : vector<16xf32> to vector<16x1xf32>
      %cst_92 = arith.constant 3.200000e+01 : f32
      %223 = vector.broadcast %cst_92 : f32 to vector<16x1xf32>
      %224 = arith.divf %222, %223 : vector<16x1xf32>
      %225 = vector.broadcast %217 : vector<16x1xf32> to vector<16x32xf32>
      %226 = arith.subf %205, %225 : vector<16x32xf32>
      %cst_93 = arith.constant 9.99999974E-6 : f32
      %227 = vector.broadcast %cst_93 : f32 to vector<16x1xf32>
      %228 = arith.addf %224, %227 : vector<16x1xf32>
      %229 = math.rsqrt %228 : vector<16x1xf32>
      %230 = vector.broadcast %229 : vector<16x1xf32> to vector<16x32xf32>
      %231 = arith.mulf %226, %230 : vector<16x32xf32>
      %232 = vector.broadcast %212 : vector<1x32xf32> to vector<16x32xf32>
      %233 = arith.mulf %231, %232 : vector<16x32xf32>
      %234 = vector.broadcast %213 : vector<1x32xf32> to vector<16x32xf32>
      %235 = arith.addf %233, %234 : vector<16x32xf32>
      %236 = vector.shape_cast %235 : vector<16x32xf32> to vector<2x8x32xf32>
      %c0_94 = arith.constant 0 : index
      %c0_95 = arith.constant 0 : index
      %c0_96 = arith.constant 0 : index
      %237 = vector.load %arg17[%c0_94, %c0_95, %c0_96] : memref<2x8x32xf32, #tpu.memory_space<vmem>>, vector<2x8x32xf32>
      tpu.vector_store %arg17[%c0_94, %c0_95, %c0_96], %236 {strides = array<i32>} : memref<2x8x32xf32, #tpu.memory_space<vmem>>, vector<2x8x32xf32>,
    } else {
    }
    return
  }
  func.func @transform_0(%arg0: i32, %arg1: i32) -> (i32, i32, i32) {
    %c0_i32 = arith.constant 0 : i32
    %c0_i32_0 = arith.constant 0 : i32
    %c0_i32_1 = arith.constant 0 : i32
    return %arg0, %c0_i32, %c0_i32_0 : i32, i32, i32
  }
  func.func @transform_1(%arg0: i32, %arg1: i32) -> (i32, i32, i32) {
    %c0_i32 = arith.constant 0 : i32
    %c0_i32_0 = arith.constant 0 : i32
    %c0_i32_1 = arith.constant 0 : i32
    return %arg1, %c0_i32, %c0_i32_0 : i32, i32, i32
  }
  func.func @transform_2(%arg0: i32, %arg1: i32) -> (i32, i32, i32) {
    %c0_i32 = arith.constant 0 : i32
    %c0_i32_0 = arith.constant 0 : i32
    %c0_i32_1 = arith.constant 0 : i32
    return %arg1, %c0_i32, %c0_i32_0 : i32, i32, i32
  }
  func.func @transform_3(%arg0: i32, %arg1: i32) -> (i32, i32, i32) {
    %c0_i32 = arith.constant 0 : i32
    %c0_i32_0 = arith.constant 0 : i32
    %c0_i32_1 = arith.constant 0 : i32
    return %arg1, %c0_i32, %c0_i32_0 : i32, i32, i32
  }
  func.func @transform_4(%arg0: i32, %arg1: i32) -> (i32, i32, i32) {
    %c0_i32 = arith.constant 0 : i32
    %c0_i32_0 = arith.constant 0 : i32
    %c0_i32_1 = arith.constant 0 : i32
    return %arg1, %c0_i32, %c0_i32_0 : i32, i32, i32
  }
  func.func @transform_5(%arg0: i32, %arg1: i32) -> (i32, i32, i32) {
    %c0_i32 = arith.constant 0 : i32
    %c0_i32_0 = arith.constant 0 : i32
    %c0_i32_1 = arith.constant 0 : i32
    return %arg1, %c0_i32, %c0_i32_0 : i32, i32, i32
  }
  func.func @transform_6(%arg0: i32, %arg1: i32) -> (i32, i32, i32) {
    %c0_i32 = arith.constant 0 : i32
    %c0_i32_0 = arith.constant 0 : i32
    %c0_i32_1 = arith.constant 0 : i32
    return %arg1, %c0_i32, %c0_i32_0 : i32, i32, i32
  }
  func.func @transform_7(%arg0: i32, %arg1: i32) -> (i32, i32, i32) {
    %c0_i32 = arith.constant 0 : i32
    %c0_i32_0 = arith.constant 0 : i32
    %c0_i32_1 = arith.constant 0 : i32
    return %arg1, %c0_i32, %c0_i32_0 : i32, i32, i32
  }
  func.func @transform_8(%arg0: i32, %arg1: i32) -> (i32, i32, i32) {
    %c0_i32 = arith.constant 0 : i32
    %c0_i32_0 = arith.constant 0 : i32
    %c0_i32_1 = arith.constant 0 : i32
    return %arg1, %c0_i32, %c0_i32_0 : i32, i32, i32
  }
  func.func @transform_9(%arg0: i32, %arg1: i32) -> (i32, i32, i32) {
    %c0_i32 = arith.constant 0 : i32
    %c0_i32_0 = arith.constant 0 : i32
    %c0_i32_1 = arith.constant 0 : i32
    return %arg1, %c0_i32, %c0_i32_0 : i32, i32, i32
  }
  func.func @transform_10(%arg0: i32, %arg1: i32) -> (i32, i32, i32) {
    %c0_i32 = arith.constant 0 : i32
    %c0_i32_0 = arith.constant 0 : i32
    %c0_i32_1 = arith.constant 0 : i32
    return %arg1, %c0_i32, %c0_i32_0 : i32, i32, i32
  }
  func.func @transform_11(%arg0: i32, %arg1: i32) -> (i32, i32, i32) {
    %c0_i32 = arith.constant 0 : i32
    %c0_i32_0 = arith.constant 0 : i32
    %c0_i32_1 = arith.constant 0 : i32
    return %arg1, %c0_i32, %c0_i32_0 : i32, i32, i32
  }
  func.func @transform_12(%arg0: i32, %arg1: i32) -> (i32, i32, i32) {
    %c0_i32 = arith.constant 0 : i32
    %c0_i32_0 = arith.constant 0 : i32
    %c0_i32_1 = arith.constant 0 : i32
    return %arg1, %c0_i32, %c0_i32_0 : i32, i32, i32
  }
  func.func @transform_13(%arg0: i32, %arg1: i32) -> (i32, i32) {
    %c0_i32 = arith.constant 0 : i32
    %c0_i32_0 = arith.constant 0 : i32
    %c0_i32_1 = arith.constant 0 : i32
    return %c0_i32, %c0_i32_0 : i32, i32
  }
  func.func @transform_14(%arg0: i32, %arg1: i32) -> (i32, i32) {
    %c0_i32 = arith.constant 0 : i32
    %c0_i32_0 = arith.constant 0 : i32
    %c0_i32_1 = arith.constant 0 : i32
    return %c0_i32, %c0_i32_0 : i32, i32
  }
  func.func @transform_15(%arg0: i32, %arg1: i32) -> (i32, i32, i32) {
    %c0_i32 = arith.constant 0 : i32
    %c0_i32_0 = arith.constant 0 : i32
    %c0_i32_1 = arith.constant 0 : i32
    return %arg0, %c0_i32, %c0_i32_0 : i32, i32, i32
  }
}

</mosaic_0001>

<llo_original>
// kernel: tpu_custom_call.1
$region0: #{tpu_custom_call.1}
  #allocation0 [shape = 'u32[]', space=smem, size = 0x4, offset = 0x4, fixed_abs, tag = 'smem constant byte address 0x4 - core index']
  #allocation1 [shape = 'u32[144,128]{1,0:T(1,128)}', space=vmem, size = 0x12000, scoped, tag = 'internal scratch']
  %s0 = inlined_call_operand.vmem [shape: f32[2,8,32], index: 0, kind: input, shape index: {}]
  %s1 = inlined_call_operand.vmem [shape: f32[2,1,32], index: 1, kind: input, shape index: {}]
  %s2 = inlined_call_operand.vmem [shape: f32[2,1,32], index: 2, kind: input, shape index: {}]
  %s3 = inlined_call_operand.vmem [shape: bf16[2,32,96], index: 3, kind: input, shape index: {}]
  %s4 = inlined_call_operand.vmem [shape: f32[2,1,96], index: 4, kind: input, shape index: {}]
  %s5 = inlined_call_operand.vmem [shape: bf16[2,32,32], index: 5, kind: input, shape index: {}]
  %s6 = inlined_call_operand.vmem [shape: f32[2,1,32], index: 6, kind: input, shape index: {}]
  %s7 = inlined_call_operand.vmem [shape: f32[2,1,32], index: 7, kind: input, shape index: {}]
  %s8 = inlined_call_operand.vmem [shape: f32[2,1,32], index: 8, kind: input, shape index: {}]
  %s9 = inlined_call_operand.vmem [shape: bf16[2,32,128], index: 9, kind: input, shape index: {}]
  %s10 = inlined_call_operand.vmem [shape: f32[2,1,128], index: 10, kind: input, shape index: {}]
  %s11 = inlined_call_operand.vmem [shape: bf16[2,128,32], index: 11, kind: input, shape index: {}]
  %s12 = inlined_call_operand.vmem [shape: f32[2,1,32], index: 12, kind: input, shape index: {}]
  %s13 = inlined_call_operand.vmem [shape: f32[1,32], index: 13, kind: input, shape index: {}]
  %s14 = inlined_call_operand.vmem [shape: f32[1,32], index: 14, kind: input, shape index: {}]
  %s15 = inlined_call_operand.hbm [shape: f32[2,8,32], index: 15, kind: output, shape index: {}]
  %s16 = sld [smem:[#allocation0]]
  $region105: #{tpu_custom_call.1} parent=0
    _
  %s18 = ssub.s32 1, %s16
  %s19 = scalar_select 0, %s18, %s16
  $region1: #{tpu_custom_call.1} parent=0
    #allocation2 [shape = 'u8[8192]{0}', space=vmem, size = 0x2000, scoped, tag = 'output window, operand 0, single buffered']
    #allocation3 [shape = 's32[2]{0}', space=sflag, size = 0x8, scoped, tag = 'scoped memory for tpu_custom_call.1']
    %20 = vsyncpa [#allocation3], 0
    loop: start=0, step=1, limit=4
    $region2: #{tpu_custom_call.1} parent=1 // loop_pre_header
      _
    $region3: #{tpu_custom_call.1} parent=1 // loop_header
      %s22 = sphi 0, %s26
      %p23 = scmp.ge.s32.totalorder %s22, 4
      %s29 = sphi 0, %s41
      %s30 = sphi 0, %s37
      %s31 = sphi 0, %s29
      %s32 = sphi 0, %s30
      %s33 = sphi 0, %s31
      %s34 = sphi 0, %s32
      %s44 = sphi 0, %s46
      %s47 = sphi 0, %s44
      %s48 = sphi 0, %s47
      %s64 = sphi 0, %s48
      %s70 = sphi 0, %s72
      %s73 = sphi 0, %s70
      %s74 = sphi 0, %s73
      %s90 = sphi 0, %s74
      %s96 = sphi 0, %s98
      %s99 = sphi 0, %s96
      %s100 = sphi 0, %s99
      %s116 = sphi 0, %s100
      %s122 = sphi 0, %s124
      %s125 = sphi 0, %s122
      %s126 = sphi 0, %s125
      %s142 = sphi 0, %s126
      %s148 = sphi 0, %s150
      %s151 = sphi 0, %s148
      %s152 = sphi 0, %s151
      %s168 = sphi 0, %s152
      %s174 = sphi 0, %s176
      %s177 = sphi 0, %s174
      %s178 = sphi 0, %s177
      %s194 = sphi 0, %s178
      %s200 = sphi 0, %s202
      %s203 = sphi 0, %s200
      %s204 = sphi 0, %s203
      %s220 = sphi 0, %s204
      %s226 = sphi 0, %s228
      %s229 = sphi 0, %s226
      %s230 = sphi 0, %s229
      %s246 = sphi 0, %s230
      %s252 = sphi 0, %s254
      %s255 = sphi 0, %s252
      %s256 = sphi 0, %s255
      %s272 = sphi 0, %s256
      %s278 = sphi 0, %s280
      %s281 = sphi 0, %s278
      %s282 = sphi 0, %s281
      %s298 = sphi 0, %s282
      %s304 = sphi 0, %s306
      %s307 = sphi 0, %s304
      %s308 = sphi 0, %s307
      %s324 = sphi 0, %s308
      %s330 = sphi 0, %s332
      %s333 = sphi 0, %s330
      %s334 = sphi 0, %s333
      %s350 = sphi 0, %s334
      %s356 = sphi 0, %s358
      %s359 = sphi 0, %s356
      %s360 = sphi 0, %s359
      %s376 = sphi 0, %s360
      %s380 = sphi 0, %s380
      %s382 = sphi 0, %s380
      %s383 = sphi 0, %s382
      %s397 = sphi 0, %s383
      %s401 = sphi 0, %s401
      %s403 = sphi 0, %s401
      %s404 = sphi 0, %s403
      %s418 = sphi 0, %s404
      %s424 = sphi 0, %s426
      %s427 = sphi 0, %s424
      %s428 = sphi 0, %s427
      %s444 = sphi 0, %s428
    $region4: #{tpu_custom_call.1} parent=1 // loop_header_branch
      %25 = sbr.rel (%p23) target = $region8
    $region5: #{tpu_custom_call.1} parent=1 // loop_body
      %s27 = ssub.s32 %s22, 1
      %s28 = ssub.s32 %s22, 2
      %s35 = sadd.s32 1, %s30
      %p36 = scmp.ge.s32.totalorder %s35, 2
      %s37 = scalar_select %p36, 0, %s35
      %s38 = sadd.s32 1, %s29
      %s39 = scalar_select %p36, %s38, %s29
      %p40 = scmp.ge.s32.totalorder %s39, 1
      %s41 = scalar_select %p40, 0, %s39
      %s42 = ssub.s32 %s29, %s41
      %p43 = scmp.eq.s32.totalorder %s42, 0
      %s45 = sadd.s32 %s44, 1
      %s46 = scalar_select %p43, %s44, %s45
      %p49 = pneg %p43
      %p50 = scmp.eq.s32.totalorder %s22, 1
      %p51 = por %p49, %p50
      %p52 = scmp.ne.s32.totalorder %s44, %s47
      %p53 = scmp.eq.s32.totalorder %s22, 0
      %p54 = por %p52, %p53
      %p55 = scmp.ne.s32.totalorder %s44, %s47
      %p56 = scmp.eq.s32.totalorder %s27, 1
      %p57 = por %p55, %p56
      %p58 = scmp.ne.s32.totalorder %s47, %s48
      %p59 = scmp.eq.s32.totalorder %s27, 0
      %p60 = por %p58, %p59
      %p61 = scmp.ne.s32.totalorder %s47, %s48
      %p62 = scmp.eq.s32.totalorder %s28, 1
      %p63 = por %p61, %p62
      %p65 = scmp.ne.s32.totalorder %s48, %s64
      %p66 = scmp.eq.s32.totalorder %s28, 0
      %p67 = por %p65, %p66
      %s68 = ssub.s32 %s30, %s37
      %p69 = scmp.eq.s32.totalorder %s68, 0
      %s71 = sadd.s32 %s70, 1
      %s72 = scalar_select %p69, %s70, %s71
      %p75 = pneg %p69
      %p76 = scmp.eq.s32.totalorder %s22, 1
      %p77 = por %p75, %p76
      %p78 = scmp.ne.s32.totalorder %s70, %s73
      %p79 = scmp.eq.s32.totalorder %s22, 0
      %p80 = por %p78, %p79
      %p81 = scmp.ne.s32.totalorder %s70, %s73
      %p82 = scmp.eq.s32.totalorder %s27, 1
      %p83 = por %p81, %p82
      %p84 = scmp.ne.s32.totalorder %s73, %s74
      %p85 = scmp.eq.s32.totalorder %s27, 0
      %p86 = por %p84, %p85
      %p87 = scmp.ne.s32.totalorder %s73, %s74
      %p88 = scmp.eq.s32.totalorder %s28, 1
      %p89 = por %p87, %p88
      %p91 = scmp.ne.s32.totalorder %s74, %s90
      %p92 = scmp.eq.s32.totalorder %s28, 0
      %p93 = por %p91, %p92
      %s94 = ssub.s32 %s30, %s37
      %p95 = scmp.eq.s32.totalorder %s94, 0
      %s97 = sadd.s32 %s96, 1
      %s98 = scalar_select %p95, %s96, %s97
      %p101 = pneg %p95
      %p102 = scmp.eq.s32.totalorder %s22, 1
      %p103 = por %p101, %p102
      %p104 = scmp.ne.s32.totalorder %s96, %s99
      %p105 = scmp.eq.s32.totalorder %s22, 0
      %p106 = por %p104, %p105
      %p107 = scmp.ne.s32.totalorder %s96, %s99
      %p108 = scmp.eq.s32.totalorder %s27, 1
      %p109 = por %p107, %p108
      %p110 = scmp.ne.s32.totalorder %s99, %s100
      %p111 = scmp.eq.s32.totalorder %s27, 0
      %p112 = por %p110, %p111
      %p113 = scmp.ne.s32.totalorder %s99, %s100
      %p114 = scmp.eq.s32.totalorder %s28, 1
      %p115 = por %p113, %p114
      %p117 = scmp.ne.s32.totalorder %s100, %s116
      %p118 = scmp.eq.s32.totalorder %s28, 0
      %p119 = por %p117, %p118
      %s120 = ssub.s32 %s30, %s37
      %p121 = scmp.eq.s32.totalorder %s120, 0
      %s123 = sadd.s32 %s122, 1
      %s124 = scalar_select %p121, %s122, %s123
      %p127 = pneg %p121
      %p128 = scmp.eq.s32.totalorder %s22, 1
      %p129 = por %p127, %p128
      %p130 = scmp.ne.s32.totalorder %s122, %s125
      %p131 = scmp.eq.s32.totalorder %s22, 0
      %p132 = por %p130, %p131
      %p133 = scmp.ne.s32.totalorder %s122, %s125
      %p134 = scmp.eq.s32.totalorder %s27, 1
      %p135 = por %p133, %p134
      %p136 = scmp.ne.s32.totalorder %s125, %s126
      %p137 = scmp.eq.s32.totalorder %s27, 0
      %p138 = por %p136, %p137
      %p139 = scmp.ne.s32.totalorder %s125, %s126
      %p140 = scmp.eq.s32.totalorder %s28, 1
      %p141 = por %p139, %p140
      %p143 = scmp.ne.s32.totalorder %s126, %s142
      %p144 = scmp.eq.s32.totalorder %s28, 0
      %p145 = por %p143, %p144
      %s146 = ssub.s32 %s30, %s37
      %p147 = scmp.eq.s32.totalorder %s146, 0
      %s149 = sadd.s32 %s148, 1
      %s150 = scalar_select %p147, %s148, %s149
      %p153 = pneg %p147
      %p154 = scmp.eq.s32.totalorder %s22, 1
      %p155 = por %p153, %p154
      %p156 = scmp.ne.s32.totalorder %s148, %s151
      %p157 = scmp.eq.s32.totalorder %s22, 0
      %p158 = por %p156, %p157
      %p159 = scmp.ne.s32.totalorder %s148, %s151
      %p160 = scmp.eq.s32.totalorder %s27, 1
      %p161 = por %p159, %p160
      %p162 = scmp.ne.s32.totalorder %s151, %s152
      %p163 = scmp.eq.s32.totalorder %s27, 0
      %p164 = por %p162, %p163
      %p165 = scmp.ne.s32.totalorder %s151, %s152
      %p166 = scmp.eq.s32.totalorder %s28, 1
      %p167 = por %p165, %p166
      %p169 = scmp.ne.s32.totalorder %s152, %s168
      %p170 = scmp.eq.s32.totalorder %s28, 0
      %p171 = por %p169, %p170
      %s172 = ssub.s32 %s30, %s37
      %p173 = scmp.eq.s32.totalorder %s172, 0
      %s175 = sadd.s32 %s174, 1
      %s176 = scalar_select %p173, %s174, %s175
      %p179 = pneg %p173
      %p180 = scmp.eq.s32.totalorder %s22, 1
      %p181 = por %p179, %p180
      %p182 = scmp.ne.s32.totalorder %s174, %s177
      %p183 = scmp.eq.s32.totalorder %s22, 0
      %p184 = por %p182, %p183
      %p185 = scmp.ne.s32.totalorder %s174, %s177
      %p186 = scmp.eq.s32.totalorder %s27, 1
      %p187 = por %p185, %p186
      %p188 = scmp.ne.s32.totalorder %s177, %s178
      %p189 = scmp.eq.s32.totalorder %s27, 0
      %p190 = por %p188, %p189
      %p191 = scmp.ne.s32.totalorder %s177, %s178
      %p192 = scmp.eq.s32.totalorder %s28, 1
      %p193 = por %p191, %p192
      %p195 = scmp.ne.s32.totalorder %s178, %s194
      %p196 = scmp.eq.s32.totalorder %s28, 0
      %p197 = por %p195, %p196
      %s198 = ssub.s32 %s30, %s37
      %p199 = scmp.eq.s32.totalorder %s198, 0
      %s201 = sadd.s32 %s200, 1
      %s202 = scalar_select %p199, %s200, %s201
      %p205 = pneg %p199
      %p206 = scmp.eq.s32.totalorder %s22, 1
      %p207 = por %p205, %p206
      %p208 = scmp.ne.s32.totalorder %s200, %s203
      %p209 = scmp.eq.s32.totalorder %s22, 0
      %p210 = por %p208, %p209
      %p211 = scmp.ne.s32.totalorder %s200, %s203
      %p212 = scmp.eq.s32.totalorder %s27, 1
      %p213 = por %p211, %p212
      %p214 = scmp.ne.s32.totalorder %s203, %s204
      %p215 = scmp.eq.s32.totalorder %s27, 0
      %p216 = por %p214, %p215
      %p217 = scmp.ne.s32.totalorder %s203, %s204
      %p218 = scmp.eq.s32.totalorder %s28, 1
      %p219 = por %p217, %p218
      %p221 = scmp.ne.s32.totalorder %s204, %s220
      %p222 = scmp.eq.s32.totalorder %s28, 0
      %p223 = por %p221, %p222
      %s224 = ssub.s32 %s30, %s37
      %p225 = scmp.eq.s32.totalorder %s224, 0
      %s227 = sadd.s32 %s226, 1
      %s228 = scalar_select %p225, %s226, %s227
      %p231 = pneg %p225
      %p232 = scmp.eq.s32.totalorder %s22, 1
      %p233 = por %p231, %p232
      %p234 = scmp.ne.s32.totalorder %s226, %s229
      %p235 = scmp.eq.s32.totalorder %s22, 0
      %p236 = por %p234, %p235
      %p237 = scmp.ne.s32.totalorder %s226, %s229
      %p238 = scmp.eq.s32.totalorder %s27, 1
      %p239 = por %p237, %p238
      %p240 = scmp.ne.s32.totalorder %s229, %s230
      %p241 = scmp.eq.s32.totalorder %s27, 0
      %p242 = por %p240, %p241
      %p243 = scmp.ne.s32.totalorder %s229, %s230
      %p244 = scmp.eq.s32.totalorder %s28, 1
      %p245 = por %p243, %p244
      %p247 = scmp.ne.s32.totalorder %s230, %s246
      %p248 = scmp.eq.s32.totalorder %s28, 0
      %p249 = por %p247, %p248
      %s250 = ssub.s32 %s30, %s37
      %p251 = scmp.eq.s32.totalorder %s250, 0
      %s253 = sadd.s32 %s252, 1
      %s254 = scalar_select %p251, %s252, %s253
      %p257 = pneg %p251
      %p258 = scmp.eq.s32.totalorder %s22, 1
      %p259 = por %p257, %p258
      %p260 = scmp.ne.s32.totalorder %s252, %s255
      %p261 = scmp.eq.s32.totalorder %s22, 0
      %p262 = por %p260, %p261
      %p263 = scmp.ne.s32.totalorder %s252, %s255
      %p264 = scmp.eq.s32.totalorder %s27, 1
      %p265 = por %p263, %p264
      %p266 = scmp.ne.s32.totalorder %s255, %s256
      %p267 = scmp.eq.s32.totalorder %s27, 0
      %p268 = por %p266, %p267
      %p269 = scmp.ne.s32.totalorder %s255, %s256
      %p270 = scmp.eq.s32.totalorder %s28, 1
      %p271 = por %p269, %p270
      %p273 = scmp.ne.s32.totalorder %s256, %s272
      %p274 = scmp.eq.s32.totalorder %s28, 0
      %p275 = por %p273, %p274
      %s276 = ssub.s32 %s30, %s37
      %p277 = scmp.eq.s32.totalorder %s276, 0
      %s279 = sadd.s32 %s278, 1
      %s280 = scalar_select %p277, %s278, %s279
      %p283 = pneg %p277
      %p284 = scmp.eq.s32.totalorder %s22, 1
      %p285 = por %p283, %p284
      %p286 = scmp.ne.s32.totalorder %s278, %s281
      %p287 = scmp.eq.s32.totalorder %s22, 0
      %p288 = por %p286, %p287
      %p289 = scmp.ne.s32.totalorder %s278, %s281
      %p290 = scmp.eq.s32.totalorder %s27, 1
      %p291 = por %p289, %p290
      %p292 = scmp.ne.s32.totalorder %s281, %s282
      %p293 = scmp.eq.s32.totalorder %s27, 0
      %p294 = por %p292, %p293
      %p295 = scmp.ne.s32.totalorder %s281, %s282
      %p296 = scmp.eq.s32.totalorder %s28, 1
      %p297 = por %p295, %p296
      %p299 = scmp.ne.s32.totalorder %s282, %s298
      %p300 = scmp.eq.s32.totalorder %s28, 0
      %p301 = por %p299, %p300
      %s302 = ssub.s32 %s30, %s37
      %p303 = scmp.eq.s32.totalorder %s302, 0
      %s305 = sadd.s32 %s304, 1
      %s306 = scalar_select %p303, %s304, %s305
      %p309 = pneg %p303
      %p310 = scmp.eq.s32.totalorder %s22, 1
      %p311 = por %p309, %p310
      %p312 = scmp.ne.s32.totalorder %s304, %s307
      %p313 = scmp.eq.s32.totalorder %s22, 0
      %p314 = por %p312, %p313
      %p315 = scmp.ne.s32.totalorder %s304, %s307
      %p316 = scmp.eq.s32.totalorder %s27, 1
      %p317 = por %p315, %p316
      %p318 = scmp.ne.s32.totalorder %s307, %s308
      %p319 = scmp.eq.s32.totalorder %s27, 0
      %p320 = por %p318, %p319
      %p321 = scmp.ne.s32.totalorder %s307, %s308
      %p322 = scmp.eq.s32.totalorder %s28, 1
      %p323 = por %p321, %p322
      %p325 = scmp.ne.s32.totalorder %s308, %s324
      %p326 = scmp.eq.s32.totalorder %s28, 0
      %p327 = por %p325, %p326
      %s328 = ssub.s32 %s30, %s37
      %p329 = scmp.eq.s32.totalorder %s328, 0
      %s331 = sadd.s32 %s330, 1
      %s332 = scalar_select %p329, %s330, %s331
      %p335 = pneg %p329
      %p336 = scmp.eq.s32.totalorder %s22, 1
      %p337 = por %p335, %p336
      %p338 = scmp.ne.s32.totalorder %s330, %s333
      %p339 = scmp.eq.s32.totalorder %s22, 0
      %p340 = por %p338, %p339
      %p341 = scmp.ne.s32.totalorder %s330, %s333
      %p342 = scmp.eq.s32.totalorder %s27, 1
      %p343 = por %p341, %p342
      %p344 = scmp.ne.s32.totalorder %s333, %s334
      %p345 = scmp.eq.s32.totalorder %s27, 0
      %p346 = por %p344, %p345
      %p347 = scmp.ne.s32.totalorder %s333, %s334
      %p348 = scmp.eq.s32.totalorder %s28, 1
      %p349 = por %p347, %p348
      %p351 = scmp.ne.s32.totalorder %s334, %s350
      %p352 = scmp.eq.s32.totalorder %s28, 0
      %p353 = por %p351, %p352
      %s354 = ssub.s32 %s30, %s37
      %p355 = scmp.eq.s32.totalorder %s354, 0
      %s357 = sadd.s32 %s356, 1
      %s358 = scalar_select %p355, %s356, %s357
      %p361 = pneg %p355
      %p362 = scmp.eq.s32.totalorder %s22, 1
      %p363 = por %p361, %p362
      %p364 = scmp.ne.s32.totalorder %s356, %s359
      %p365 = scmp.eq.s32.totalorder %s22, 0
      %p366 = por %p364, %p365
      %p367 = scmp.ne.s32.totalorder %s356, %s359
      %p368 = scmp.eq.s32.totalorder %s27, 1
      %p369 = por %p367, %p368
      %p370 = scmp.ne.s32.totalorder %s359, %s360
      %p371 = scmp.eq.s32.totalorder %s27, 0
      %p372 = por %p370, %p371
      %p373 = scmp.ne.s32.totalorder %s359, %s360
      %p374 = scmp.eq.s32.totalorder %s28, 1
      %p375 = por %p373, %p374
      %p377 = scmp.ne.s32.totalorder %s360, %s376
      %p378 = scmp.eq.s32.totalorder %s28, 0
      %p379 = por %p377, %p378
      %s381 = sadd.s32 %s380, 1
      %p384 = scmp.eq.s32.totalorder %s22, 1
      %p385 = scmp.ne.s32.totalorder %s380, %s382
      %p386 = scmp.eq.s32.totalorder %s22, 0
      %p387 = por %p385, %p386
      %p388 = scmp.ne.s32.totalorder %s380, %s382
      %p389 = scmp.eq.s32.totalorder %s27, 1
      %p390 = por %p388, %p389
      %p391 = scmp.ne.s32.totalorder %s382, %s383
      %p392 = scmp.eq.s32.totalorder %s27, 0
      %p393 = por %p391, %p392
      %p394 = scmp.ne.s32.totalorder %s382, %s383
      %p395 = scmp.eq.s32.totalorder %s28, 1
      %p396 = por %p394, %p395
      %p398 = scmp.ne.s32.totalorder %s383, %s397
      %p399 = scmp.eq.s32.totalorder %s28, 0
      %p400 = por %p398, %p399
      %s402 = sadd.s32 %s401, 1
      %p405 = scmp.eq.s32.totalorder %s22, 1
      %p406 = scmp.ne.s32.totalorder %s401, %s403
      %p407 = scmp.eq.s32.totalorder %s22, 0
      %p408 = por %p406, %p407
      %p409 = scmp.ne.s32.totalorder %s401, %s403
      %p410 = scmp.eq.s32.totalorder %s27, 1
      %p411 = por %p409, %p410
      %p412 = scmp.ne.s32.totalorder %s403, %s404
      %p413 = scmp.eq.s32.totalorder %s27, 0
      %p414 = por %p412, %p413
      %p415 = scmp.ne.s32.totalorder %s403, %s404
      %p416 = scmp.eq.s32.totalorder %s28, 1
      %p417 = por %p415, %p416
      %p419 = scmp.ne.s32.totalorder %s404, %s418
      %p420 = scmp.eq.s32.totalorder %s28, 0
      %p421 = por %p419, %p420
      %s422 = ssub.s32 %s29, %s41
      %p423 = scmp.eq.s32.totalorder %s422, 0
      %s425 = sadd.s32 %s424, 1
      %s426 = scalar_select %p423, %s424, %s425
      %p429 = pneg %p423
      %p430 = scmp.eq.s32.totalorder %s22, 1
      %p431 = por %p429, %p430
      %p432 = scmp.ne.s32.totalorder %s424, %s427
      %p433 = scmp.eq.s32.totalorder %s22, 0
      %p434 = por %p432, %p433
      %p435 = scmp.ne.s32.totalorder %s424, %s427
      %p436 = scmp.eq.s32.totalorder %s27, 1
      %p437 = por %p435, %p436
      %p438 = scmp.ne.s32.totalorder %s427, %s428
      %p439 = scmp.eq.s32.totalorder %s27, 0
      %p440 = por %p438, %p439
      %p441 = scmp.ne.s32.totalorder %s427, %s428
      %p442 = scmp.eq.s32.totalorder %s28, 1
      %p443 = por %p441, %p442
      %p445 = scmp.ne.s32.totalorder %s428, %s444
      %p446 = scmp.eq.s32.totalorder %s28, 0
      %p447 = por %p445, %p446
      %p448 = scmp.le.s32.totalorder 1, %s22
      %p449 = scmp.lt.s32.totalorder %s22, 3
      %p450 = pnand %p448, %p449
      %p451 = pneg %p450
      // Predicated region
      $region9: #{tpu_custom_call.1} parent=5 // pred_check
        _
      $region10: #{tpu_custom_call.1} parent=5 // pred_check_branch
        %453 = sbr.rel (%p450) target = $region12
      $region11: #{tpu_custom_call.1} parent=5 // pred_region
        %s454 = ssub.s32 %s22, 1
        // Predicated region
        $region13: #{tpu_custom_call.1} parent=11 // pred_check
          %p455 = pneg %p60
        $region14: #{tpu_custom_call.1} parent=11 // pred_check_branch
          %457 = sbr.rel (%p455) target = $region16
        $region15: #{tpu_custom_call.1} parent=11 // pred_region
          %s458 = smul.u32 2, %s31
          %p459 = scmp.lt.s32.totalorder %s458, 1
          %s460 = scalar_select %p459, %s458, 1
          %s461 = smul.addr %s460, 8
          %s462 = scalar_lea.vmem %s0, %s461
          %s463 = smul.u32 2, %s31
        $region16: #{tpu_custom_call.1} parent=11 // pred_fallthru
          _
        // Predicated region
        $region17: #{tpu_custom_call.1} parent=11 // pred_check
          %p464 = pneg %p393
        $region18: #{tpu_custom_call.1} parent=11 // pred_check_branch
          %466 = sbr.rel (%p464) target = $region20
        $region19: #{tpu_custom_call.1} parent=11 // pred_region
          _
        $region20: #{tpu_custom_call.1} parent=11 // pred_fallthru
          _
        // Predicated region
        $region21: #{tpu_custom_call.1} parent=11 // pred_check
          %p467 = pneg %p414
        $region22: #{tpu_custom_call.1} parent=11 // pred_check_branch
          %469 = sbr.rel (%p467) target = $region24
        $region23: #{tpu_custom_call.1} parent=11 // pred_region
          _
        $region24: #{tpu_custom_call.1} parent=11 // pred_fallthru
          _
      $region12: #{tpu_custom_call.1} parent=5 // pred_fallthru
        _
      %p470 = scmp.lt.s32.totalorder %s22, 2
      // Predicated region
      $region25: #{tpu_custom_call.1} parent=5 // pred_check
        %p471 = pneg %p470
      $region26: #{tpu_custom_call.1} parent=5 // pred_check_branch
        %473 = sbr.rel (%p471) target = $region28
      $region27: #{tpu_custom_call.1} parent=5 // pred_region
        // Predicated region
        $region29: #{tpu_custom_call.1} parent=27 // pred_check
          %p474 = pneg %p80
        $region30: #{tpu_custom_call.1} parent=27 // pred_check_branch
          %476 = sbr.rel (%p474) target = $region32
        $region31: #{tpu_custom_call.1} parent=27 // pred_region
          %p477 = scmp.lt.s32.totalorder %s30, 1
          %s478 = scalar_select %p477, %s30, 1
          %s479 = scalar_lea.vmem %s1, %s478
        $region32: #{tpu_custom_call.1} parent=27 // pred_fallthru
          _
        // Predicated region
        $region33: #{tpu_custom_call.1} parent=27 // pred_check
          %p480 = pneg %p106
        $region34: #{tpu_custom_call.1} parent=27 // pred_check_branch
          %482 = sbr.rel (%p480) target = $region36
        $region35: #{tpu_custom_call.1} parent=27 // pred_region
          %p483 = scmp.lt.s32.totalorder %s30, 1
          %s484 = scalar_select %p483, %s30, 1
          %s485 = scalar_lea.vmem %s2, %s484
        $region36: #{tpu_custom_call.1} parent=27 // pred_fallthru
          _
        // Predicated region
        $region37: #{tpu_custom_call.1} parent=27 // pred_check
          %p486 = pneg %p132
        $region38: #{tpu_custom_call.1} parent=27 // pred_check_branch
          %488 = sbr.rel (%p486) target = $region40
        $region39: #{tpu_custom_call.1} parent=27 // pred_region
          %p489 = scmp.lt.s32.totalorder %s30, 1
          %s490 = scalar_select %p489, %s30, 1
          %s491 = smul.addr %s490, 4
          %s492 = smul.addr %s491, 4
          %s493 = scalar_lea.vmem %s3, %s492
        $region40: #{tpu_custom_call.1} parent=27 // pred_fallthru
          _
        // Predicated region
        $region41: #{tpu_custom_call.1} parent=27 // pred_check
          %p494 = pneg %p158
        $region42: #{tpu_custom_call.1} parent=27 // pred_check_branch
          %496 = sbr.rel (%p494) target = $region44
        $region43: #{tpu_custom_call.1} parent=27 // pred_region
          %p497 = scmp.lt.s32.totalorder %s30, 1
          %s498 = scalar_select %p497, %s30, 1
          %s499 = scalar_lea.vmem %s4, %s498
        $region44: #{tpu_custom_call.1} parent=27 // pred_fallthru
          _
        // Predicated region
        $region45: #{tpu_custom_call.1} parent=27 // pred_check
          %p500 = pneg %p184
        $region46: #{tpu_custom_call.1} parent=27 // pred_check_branch
          %502 = sbr.rel (%p500) target = $region48
        $region47: #{tpu_custom_call.1} parent=27 // pred_region
          %p503 = scmp.lt.s32.totalorder %s30, 1
          %s504 = scalar_select %p503, %s30, 1
          %s505 = smul.addr %s504, 4
          %s506 = smul.addr %s505, 4
          %s507 = scalar_lea.vmem %s5, %s506
        $region48: #{tpu_custom_call.1} parent=27 // pred_fallthru
          _
        // Predicated region
        $region49: #{tpu_custom_call.1} parent=27 // pred_check
          %p508 = pneg %p210
        $region50: #{tpu_custom_call.1} parent=27 // pred_check_branch
          %510 = sbr.rel (%p508) target = $region52
        $region51: #{tpu_custom_call.1} parent=27 // pred_region
          %p511 = scmp.lt.s32.totalorder %s30, 1
          %s512 = scalar_select %p511, %s30, 1
          %s513 = scalar_lea.vmem %s6, %s512
        $region52: #{tpu_custom_call.1} parent=27 // pred_fallthru
          _
        // Predicated region
        $region53: #{tpu_custom_call.1} parent=27 // pred_check
          %p514 = pneg %p236
        $region54: #{tpu_custom_call.1} parent=27 // pred_check_branch
          %516 = sbr.rel (%p514) target = $region56
        $region55: #{tpu_custom_call.1} parent=27 // pred_region
          %p517 = scmp.lt.s32.totalorder %s30, 1
          %s518 = scalar_select %p517, %s30, 1
          %s519 = scalar_lea.vmem %s7, %s518
        $region56: #{tpu_custom_call.1} parent=27 // pred_fallthru
          _
        // Predicated region
        $region57: #{tpu_custom_call.1} parent=27 // pred_check
          %p520 = pneg %p262
        $region58: #{tpu_custom_call.1} parent=27 // pred_check_branch
          %522 = sbr.rel (%p520) target = $region60
        $region59: #{tpu_custom_call.1} parent=27 // pred_region
          %p523 = scmp.lt.s32.totalorder %s30, 1
          %s524 = scalar_select %p523, %s30, 1
          %s525 = scalar_lea.vmem %s8, %s524
        $region60: #{tpu_custom_call.1} parent=27 // pred_fallthru
          _
        // Predicated region
        $region61: #{tpu_custom_call.1} parent=27 // pred_check
          %p526 = pneg %p288
        $region62: #{tpu_custom_call.1} parent=27 // pred_check_branch
          %528 = sbr.rel (%p526) target = $region64
        $region63: #{tpu_custom_call.1} parent=27 // pred_region
          %p529 = scmp.lt.s32.totalorder %s30, 1
          %s530 = scalar_select %p529, %s30, 1
          %s531 = smul.addr %s530, 4
          %s532 = smul.addr %s531, 4
          %s533 = scalar_lea.vmem %s9, %s532
        $region64: #{tpu_custom_call.1} parent=27 // pred_fallthru
          _
        // Predicated region
        $region65: #{tpu_custom_call.1} parent=27 // pred_check
          %p534 = pneg %p314
        $region66: #{tpu_custom_call.1} parent=27 // pred_check_branch
          %536 = sbr.rel (%p534) target = $region68
        $region67: #{tpu_custom_call.1} parent=27 // pred_region
          %p537 = scmp.lt.s32.totalorder %s30, 1
          %s538 = scalar_select %p537, %s30, 1
          %s539 = scalar_lea.vmem %s10, %s538
        $region68: #{tpu_custom_call.1} parent=27 // pred_fallthru
          _
        // Predicated region
        $region69: #{tpu_custom_call.1} parent=27 // pred_check
          %p540 = pneg %p340
        $region70: #{tpu_custom_call.1} parent=27 // pred_check_branch
          %542 = sbr.rel (%p540) target = $region72
        $region71: #{tpu_custom_call.1} parent=27 // pred_region
          %p543 = scmp.lt.s32.totalorder %s30, 1
          %s544 = scalar_select %p543, %s30, 1
          %s545 = smul.addr %s544, 16
          %s546 = smul.addr %s545, 4
          %s547 = scalar_lea.vmem %s11, %s546
        $region72: #{tpu_custom_call.1} parent=27 // pred_fallthru
          _
        // Predicated region
        $region73: #{tpu_custom_call.1} parent=27 // pred_check
          %p548 = pneg %p366
        $region74: #{tpu_custom_call.1} parent=27 // pred_check_branch
          %550 = sbr.rel (%p548) target = $region76
        $region75: #{tpu_custom_call.1} parent=27 // pred_region
          %p551 = scmp.lt.s32.totalorder %s30, 1
          %s552 = scalar_select %p551, %s30, 1
          %s553 = scalar_lea.vmem %s12, %s552
        $region76: #{tpu_custom_call.1} parent=27 // pred_fallthru
          _
      $region28: #{tpu_custom_call.1} parent=5 // pred_fallthru
        _
      %p554 = scmp.le.s32.totalorder 1, %s22
      %p555 = scmp.lt.s32.totalorder %s22, 3
      %p556 = pnand %p554, %p555
      %p557 = pneg %p556
      // Predicated region
      $region77: #{tpu_custom_call.1} parent=5 // pred_check
        _
      $region78: #{tpu_custom_call.1} parent=5 // pred_check_branch
        %559 = sbr.rel (%p556) target = $region80
      $region79: #{tpu_custom_call.1} parent=5 // pred_region
        %s560 = ssub.s32 %s22, 1
        %s561 = smul.u32 2, %s31
        %p562 = scmp.lt.s32.totalorder %s561, 1
        %s563 = scalar_select %p562, %s561, 1
        %s564 = smul.addr %s563, 8
        %s565 = scalar_lea.vmem %s0, %s564
        %p566 = pneg %p60
        %p567 = pneg %p57
        %p568 = scmp.lt.s32.totalorder %s32, 1
        %s569 = scalar_select %p568, %s32, 1
        %s570 = scalar_lea.vmem %s1, %s569
        %p571 = pneg %p86
        %p572 = pneg %p83
        %p573 = scmp.lt.s32.totalorder %s32, 1
        %s574 = scalar_select %p573, %s32, 1
        %s575 = scalar_lea.vmem %s2, %s574
        %p576 = pneg %p112
        %p577 = pneg %p109
        %p578 = scmp.lt.s32.totalorder %s32, 1
        %s579 = scalar_select %p578, %s32, 1
        %s580 = smul.addr %s579, 4
        %s581 = smul.addr %s580, 4
        %s582 = scalar_lea.vmem %s3, %s581
        %p583 = pneg %p138
        %p584 = pneg %p135
        %p585 = scmp.lt.s32.totalorder %s32, 1
        %s586 = scalar_select %p585, %s32, 1
        %s587 = scalar_lea.vmem %s4, %s586
        %p588 = pneg %p164
        %p589 = pneg %p161
        %p590 = scmp.lt.s32.totalorder %s32, 1
        %s591 = scalar_select %p590, %s32, 1
        %s592 = smul.addr %s591, 4
        %s593 = smul.addr %s592, 4
        %s594 = scalar_lea.vmem %s5, %s593
        %p595 = pneg %p190
        %p596 = pneg %p187
        %p597 = scmp.lt.s32.totalorder %s32, 1
        %s598 = scalar_select %p597, %s32, 1
        %s599 = scalar_lea.vmem %s6, %s598
        %p600 = pneg %p216
        %p601 = pneg %p213
        %p602 = scmp.lt.s32.totalorder %s32, 1
        %s603 = scalar_select %p602, %s32, 1
        %s604 = scalar_lea.vmem %s7, %s603
        %p605 = pneg %p242
        %p606 = pneg %p239
        %p607 = scmp.lt.s32.totalorder %s32, 1
        %s608 = scalar_select %p607, %s32, 1
        %s609 = scalar_lea.vmem %s8, %s608
        %p610 = pneg %p268
        %p611 = pneg %p265
        %p612 = scmp.lt.s32.totalorder %s32, 1
        %s613 = scalar_select %p612, %s32, 1
        %s614 = smul.addr %s613, 4
        %s615 = smul.addr %s614, 4
        %s616 = scalar_lea.vmem %s9, %s615
        %p617 = pneg %p294
        %p618 = pneg %p291
        %p619 = scmp.lt.s32.totalorder %s32, 1
        %s620 = scalar_select %p619, %s32, 1
        %s621 = scalar_lea.vmem %s10, %s620
        %p622 = pneg %p320
        %p623 = pneg %p317
        %p624 = scmp.lt.s32.totalorder %s32, 1
        %s625 = scalar_select %p624, %s32, 1
        %s626 = smul.addr %s625, 16
        %s627 = smul.addr %s626, 4
        %s628 = scalar_lea.vmem %s11, %s627
        %p629 = pneg %p346
        %p630 = pneg %p343
        %p631 = scmp.lt.s32.totalorder %s32, 1
        %s632 = scalar_select %p631, %s32, 1
        %s633 = scalar_lea.vmem %s12, %s632
        %p634 = pneg %p372
        %p635 = pneg %p369
        %p636 = pneg %p393
        %p637 = pneg %p390
        %p638 = pneg %p414
        %p639 = pneg %p411
        %p640 = pneg %p440
        %p641 = pneg %p437
        %s642 = smul.u32 2, %s31
        %p643 = scmp.lt.s32.totalorder %s642, 1
        %s644 = scalar_select %p643, %s642, 1
        %s645 = smul.addr %s644, 8
        %s646 = scalar_lea.vmem %s0, %s645
        %s647 = smul.u32 2, %s31
        %p648 = scmp.lt.s32.totalorder %s32, 1
        %s649 = scalar_select %p648, %s32, 1
        %s650 = scalar_lea.vmem %s1, %s649
        %p651 = scmp.lt.s32.totalorder %s32, 1
        %s652 = scalar_select %p651, %s32, 1
        %s653 = scalar_lea.vmem %s2, %s652
        %p654 = scmp.lt.s32.totalorder %s32, 1
        %s655 = scalar_select %p654, %s32, 1
        %s656 = smul.addr %s655, 4
        %s657 = smul.addr %s656, 4
        %s658 = scalar_lea.vmem %s3, %s657
        %p659 = scmp.lt.s32.totalorder %s32, 1
        %s660 = scalar_select %p659, %s32, 1
        %s661 = scalar_lea.vmem %s4, %s660
        %p662 = scmp.lt.s32.totalorder %s32, 1
        %s663 = scalar_select %p662, %s32, 1
        %s664 = smul.addr %s663, 4
        %s665 = smul.addr %s664, 4
        %s666 = scalar_lea.vmem %s5, %s665
        %p667 = scmp.lt.s32.totalorder %s32, 1
        %s668 = scalar_select %p667, %s32, 1
        %s669 = scalar_lea.vmem %s6, %s668
        %p670 = scmp.lt.s32.totalorder %s32, 1
        %s671 = scalar_select %p670, %s32, 1
        %s672 = scalar_lea.vmem %s7, %s671
        %p673 = scmp.lt.s32.totalorder %s32, 1
        %s674 = scalar_select %p673, %s32, 1
        %s675 = scalar_lea.vmem %s8, %s674
        %p676 = scmp.lt.s32.totalorder %s32, 1
        %s677 = scalar_select %p676, %s32, 1
        %s678 = smul.addr %s677, 4
        %s679 = smul.addr %s678, 4
        %s680 = scalar_lea.vmem %s9, %s679
        %p681 = scmp.lt.s32.totalorder %s32, 1
        %s682 = scalar_select %p681, %s32, 1
        %s683 = scalar_lea.vmem %s10, %s682
        %p684 = scmp.lt.s32.totalorder %s32, 1
        %s685 = scalar_select %p684, %s32, 1
        %s686 = smul.addr %s685, 16
        %s687 = smul.addr %s686, 4
        %s688 = scalar_lea.vmem %s11, %s687
        %p689 = scmp.lt.s32.totalorder %s32, 1
        %s690 = scalar_select %p689, %s32, 1
        %s691 = scalar_lea.vmem %s12, %s690
        %s692 = smul.u32 2, %s31
        %p694 = scmp.eq.s32.totalorder %s32, 0
        // Predicated region
        $region81: #{tpu_custom_call.1} parent=79 // pred_check
          %p695 = pneg %p694
        $region82: #{tpu_custom_call.1} parent=79 // pred_check_branch
          %697 = sbr.rel (%p695) target = $region84
        $region83: #{tpu_custom_call.1} parent=79 // pred_region
          %v698 = vld [vmem:[%s646] sm:$0xff]
          %v699 = vld [vmem:[%s646 + $0x8] sm:$0xff]
          %vm700 = vcmask 261120
          %701 = vst.msk [vmem:[#allocation2] sm:$0xff] %vm700, %v698
          %702 = vst.msk [vmem:[#allocation2 + $0x8] sm:$0xff] %vm700, %v699
        $region84: #{tpu_custom_call.1} parent=79 // pred_fallthru
          _
        %v703 = vld [vmem:[#allocation2] sm:$0xff]
        %v704 = vld [vmem:[#allocation2 + $0x8] sm:$0xff]
        %v705 = vld [vmem:[%s650] sm:$0x1]
        %v706 = vld [vmem:[%s653] sm:$0x1]
        %vm707 = vcmask 261120
        %v708 = vsel %vm707, %v703, 0.0
        %709 = vadd.xlane.f32.xlu0 %v708
        %v710 = vpop.xlane.xlu0 %709
        %v711 = vsel %vm707, %v704, 0.0
        %712 = vadd.xlane.f32.xlu0 %v711
        %v713 = vpop.xlane.xlu0 %712
        %v714 = vrcp.pop 32.0
        %v715 = vmul.f32 %v710, %v714
        %v716 = vmul.f32 %v713, %v714
        %v717 = vsub.f32 %v703, %v715
        %v718 = vsub.f32 %v704, %v716
        %v719 = vmul.f32 %v717, %v717
        %v720 = vmul.f32 %v718, %v718
        %v721 = vsel %vm707, %v719, 0.0
        %722 = vadd.xlane.f32.xlu0 %v721
        %v723 = vpop.xlane.xlu0 %722
        %v724 = vsel %vm707, %v720, 0.0
        %725 = vadd.xlane.f32.xlu0 %v724
        %v726 = vpop.xlane.xlu0 %725
        %v727 = vmul.f32 %v723, %v714
        %v728 = vmul.f32 %v726, %v714
        %v729 = vadd.f32 %v727, 1e-05
        %v730 = vadd.f32 %v728, 1e-05
        %v731 = vrsqrt.pop %v729
        %v732 = vrsqrt.pop %v730
        %v733 = vmul.f32 %v717, %v731
        %v734 = vmul.f32 %v718, %v732
        %v736 = vlaneseq
        %v737 = vshrl.u32 %v736, 7
        %v738 = vsub.s32 0, %v737
        %v739 = vrot.slane %v705, %v738
        %v741 = vmul.f32 %v733, %v739
        %v742 = vmul.f32 %v734, %v739
        %v744 = vlaneseq
        %v745 = vshrl.u32 %v744, 7
        %v746 = vsub.s32 0, %v745
        %v747 = vrot.slane %v706, %v746
        %v749 = vadd.f32 %v741, %v747
        %v750 = vadd.f32 %v742, %v747
        %v751 = vpack.c.bf16 %v750, %v749
        %v752 = vld [vmem:[%s658] sm:$0xf]
        %v753 = vld [vmem:[%s658 + $0x4] sm:$0xf]
        %v754 = vld [vmem:[%s658 + $0x8] sm:$0xf]
        %v755 = vld [vmem:[%s658 + $0xc] sm:$0xf]
        %v756 = vld [vmem:[%s661] sm:$0x1]
        %v758 = vlaneseq
        %v759 = vshrl.u32 %v758, 7
        %v760 = vsub.s32 0, %v759
        %v761 = vrot.slane %v756, %v760
        %v767 = vunpack.c.l.b16 %v752
        %v768 = vunpack.c.l.b16 %v753
        %v769 = vunpack.c.l.b16 %v754
        %v770 = vunpack.c.l.b16 %v755
        %v771 = vpack.c.b16 %v768, %v767
        %v772 = vpack.c.b16 %v770, %v769
        %v776 = vsel %vm707, %v751, 0
        %778 = vmatprep.subr.bf16.mxu0 0
        %779 = vmatpush1.bf16.msra.mxu0 %v771
        %780 = vmatprep.subr.bf16.mxu0 0
        %781 = vmatpush1.bf16.msra.mxu0 %v772
        %782 = vmatprep.subr.bf16.mxu0 0
        %783 = vmatpush1.bf16.msra.mxu0 0
        %784 = vmatprep.subr.bf16.mxu0 0
        %785 = vmatpush1.bf16.msra.mxu0 0
        %786 = vmatprep.subr.bf16.mxu0 0
        %787 = vmatpush1.bf16.msra.mxu0 0
        %788 = vmatprep.subr.bf16.mxu0 0
        %789 = vmatpush1.bf16.msra.mxu0 0
        %790 = vmatprep.subr.bf16.mxu0 0
        %791 = vmatpush1.bf16.msra.mxu0 0
        %792 = vmatprep.subr.bf16.mxu0 0
        %793 = vmatpush1.bf16.msra.mxu0 0
        %794 = vmatprep.subr.bf16.mxu0 0
        %795 = vmatpush1.bf16.msra.mxu0 0
        %796 = vmatprep.subr.bf16.mxu0 0
        %797 = vmatpush1.bf16.msra.mxu0 0
        %798 = vmatprep.subr.bf16.mxu0 0
        %799 = vmatpush1.bf16.msra.mxu0 0
        %800 = vmatprep.subr.bf16.mxu0 0
        %801 = vmatpush1.bf16.msra.mxu0 0
        %802 = vmatprep.subr.bf16.mxu0 0
        %803 = vmatpush1.bf16.msra.mxu0 0
        %804 = vmatprep.subr.bf16.mxu0 0
        %805 = vmatpush1.bf16.msra.mxu0 0
        %806 = vmatprep.subr.bf16.mxu0 0
        %807 = vmatpush1.bf16.msra.mxu0 0
        %808 = vmatprep.subr.bf16.mxu0 0
        %809 = vmatpush1.bf16.msra.mxu0 0
        %810 = vmatprep.mubr.bf16.mxu0 0
        %811 = vmatmul.mubr.bf16.gmra.mrb[0].mxu0 %v776
        %v812 = vpop.f32.mrb[0].mxu0
        %v813 = vadd.f32 %v761, %v812
        %v814 = vpop.f32.mrb[0].mxu0
        %v815 = vpop.f32.mrb[0].mxu0
        %v816 = vadd.f32 %v761, %v815
        %v817 = vpop.f32.mrb[0].mxu0
        %818 = vdwg.mxu0
        %v819 = vpack.c.bf16 %v816, %v813
        %v821 = vunpack.c.l.b16 %v819
        %v822 = vunpack.c.h.b16 %v819
        %v823 = vpack.c.b16 %v821, %v821
        %v824 = vpack.c.b16 %v822, %v822
        %v825 = vlaneseq
        %v826 = vshrl.u32 %v825, 7
        %v827 = vlaneseq
        %v828 = vand.u32 %v827, 127
        %vm829 = vcmp.gt.s32.totalorder %v828, %v826
        %v830 = vsel %vm829, -1e+30, 0.0
        %831 = vrot.lane.b32.xlu0 %v823, 96
        %v832 = vpop.permute.xlu0 %831
        %vm833 = vcmask 64512
        %v835 = vsel %vm833, %v823, 0
        %v838 = vsel %vm833, %v832, 0
        %840 = vmatprep.subr.bf16.mxu0 0
        %841 = vmatpush1.bf16.xpose.msra.mxu0 %v838
        %842 = vmatprep.subr.bf16.mxu0 0
        %843 = vmatpush1.bf16.xpose.msra.mxu0 0
        %844 = vmatprep.subr.bf16.mxu0 0
        %845 = vmatpush1.bf16.xpose.msra.mxu0 0
        %846 = vmatprep.subr.bf16.mxu0 0
        %847 = vmatpush1.bf16.xpose.msra.mxu0 0
        %848 = vmatprep.subr.bf16.mxu0 0
        %849 = vmatpush1.bf16.xpose.msra.mxu0 0
        %850 = vmatprep.subr.bf16.mxu0 0
        %851 = vmatpush1.bf16.xpose.msra.mxu0 0
        %852 = vmatprep.subr.bf16.mxu0 0
        %853 = vmatpush1.bf16.xpose.msra.mxu0 0
        %854 = vmatprep.subr.bf16.mxu0 0
        %855 = vmatpush1.bf16.xpose.msra.mxu0 0
        %856 = vmatprep.subr.bf16.mxu0 0
        %857 = vmatpush1.bf16.xpose.msra.mxu0 0
        %858 = vmatprep.subr.bf16.mxu0 0
        %859 = vmatpush1.bf16.xpose.msra.mxu0 0
        %860 = vmatprep.subr.bf16.mxu0 0
        %861 = vmatpush1.bf16.xpose.msra.mxu0 0
        %862 = vmatprep.subr.bf16.mxu0 0
        %863 = vmatpush1.bf16.xpose.msra.mxu0 0
        %864 = vmatprep.subr.bf16.mxu0 0
        %865 = vmatpush1.bf16.xpose.msra.mxu0 0
        %866 = vmatprep.subr.bf16.mxu0 0
        %867 = vmatpush1.bf16.xpose.msra.mxu0 0
        %868 = vmatprep.subr.bf16.mxu0 0
        %869 = vmatpush1.bf16.xpose.msra.mxu0 0
        %870 = vmatprep.subr.bf16.mxu0 0
        %871 = vmatpush1.bf16.xpose.msra.mxu0 0
        %872 = vmatprep.mubr.bf16.mxu0 0
        %873 = vmatmul.mubr.bf16.gmra.mrb[0].mxu0 %v835
        %v874 = vpop.f32.mrb[0].mxu0
        %v875 = vadd.f32 %v830, %v874
        %v876 = vpop.f32.mrb[0].mxu0
        %v877 = vpop.f32.mrb[0].mxu0
        %v878 = vpop.f32.mrb[0].mxu0
        %879 = vdwg.mxu0
        %880 = vrot.lane.b32.xlu0 %v824, 96
        %v881 = vpop.permute.xlu0 %880
        %v883 = vsel %vm833, %v824, 0
        %v886 = vsel %vm833, %v881, 0
        %888 = vmatprep.subr.bf16.mxu0 0
        %889 = vmatpush1.bf16.xpose.msra.mxu0 %v886
        %890 = vmatprep.subr.bf16.mxu0 0
        %891 = vmatpush1.bf16.xpose.msra.mxu0 0
        %892 = vmatprep.subr.bf16.mxu0 0
        %893 = vmatpush1.bf16.xpose.msra.mxu0 0
        %894 = vmatprep.subr.bf16.mxu0 0
        %895 = vmatpush1.bf16.xpose.msra.mxu0 0
        %896 = vmatprep.subr.bf16.mxu0 0
        %897 = vmatpush1.bf16.xpose.msra.mxu0 0
        %898 = vmatprep.subr.bf16.mxu0 0
        %899 = vmatpush1.bf16.xpose.msra.mxu0 0
        %900 = vmatprep.subr.bf16.mxu0 0
        %901 = vmatpush1.bf16.xpose.msra.mxu0 0
        %902 = vmatprep.subr.bf16.mxu0 0
        %903 = vmatpush1.bf16.xpose.msra.mxu0 0
        %904 = vmatprep.subr.bf16.mxu0 0
        %905 = vmatpush1.bf16.xpose.msra.mxu0 0
        %906 = vmatprep.subr.bf16.mxu0 0
        %907 = vmatpush1.bf16.xpose.msra.mxu0 0
        %908 = vmatprep.subr.bf16.mxu0 0
        %909 = vmatpush1.bf16.xpose.msra.mxu0 0
        %910 = vmatprep.subr.bf16.mxu0 0
        %911 = vmatpush1.bf16.xpose.msra.mxu0 0
        %912 = vmatprep.subr.bf16.mxu0 0
        %913 = vmatpush1.bf16.xpose.msra.mxu0 0
        %914 = vmatprep.subr.bf16.mxu0 0
        %915 = vmatpush1.bf16.xpose.msra.mxu0 0
        %916 = vmatprep.subr.bf16.mxu0 0
        %917 = vmatpush1.bf16.xpose.msra.mxu0 0
        %918 = vmatprep.subr.bf16.mxu0 0
        %919 = vmatpush1.bf16.xpose.msra.mxu0 0
        %920 = vmatprep.mubr.bf16.mxu0 0
        %921 = vmatmul.mubr.bf16.gmra.mrb[0].mxu0 %v883
        %v922 = vpop.f32.mrb[0].mxu0
        %v923 = vadd.f32 %v830, %v922
        %v924 = vpop.f32.mrb[0].mxu0
        %v925 = vpop.f32.mrb[0].mxu0
        %v926 = vpop.f32.mrb[0].mxu0
        %927 = vdwg.mxu0
        %v928 = vsel %vm833, %v875, -inf
        %929 = vmax.xlane.f32.xlu0 %v928
        %v930 = vpop.xlane.xlu0 %929
        %v931 = vsel %vm833, %v923, -inf
        %932 = vmax.xlane.f32.xlu0 %v931
        %v933 = vpop.xlane.xlu0 %932
        %v934 = vsub.f32 %v875, %v930
        %v935 = vsub.f32 %v923, %v933
        %v936 = vmul.f32 %v934, 1.442695
        %v937 = vpow.pop %v936
        %v938 = vmul.f32 %v935, 1.442695
        %v939 = vpow.pop %v938
        %v940 = vsel %vm833, %v937, 0.0
        %941 = vadd.xlane.f32.xlu0 %v940
        %v942 = vpop.xlane.xlu0 %941
        %v943 = vsel %vm833, %v939, 0.0
        %944 = vadd.xlane.f32.xlu0 %v943
        %v945 = vpop.xlane.xlu0 %944
        %v946 = vrcp.pop %v942
        %v947 = vrcp.pop %v945
        %v948 = vmul.f32 %v937, %v946
        %v949 = vmul.f32 %v939, %v947
        %v950 = vpack.c.bf16 %v948, %v948
        %v951 = vpack.c.bf16 %v949, %v949
        %952 = vrot.lane.b32.xlu0 %v823, 64
        %v953 = vpop.permute.xlu0 %952
        %v955 = vsel %vm833, %v950, 0
        %vm957 = vcmask 1043456
        %v959 = vsel %vm957, %v953, 0
        %961 = vmatprep.subr.bf16.mxu0 0
        %962 = vmatpush1.bf16.msra.mxu0 %v959
        %963 = vmatprep.subr.bf16.mxu0 0
        %964 = vmatpush1.bf16.msra.mxu0 0
        %965 = vmatprep.subr.bf16.mxu0 0
        %966 = vmatpush1.bf16.msra.mxu0 0
        %967 = vmatprep.subr.bf16.mxu0 0
        %968 = vmatpush1.bf16.msra.mxu0 0
        %969 = vmatprep.subr.bf16.mxu0 0
        %970 = vmatpush1.bf16.msra.mxu0 0
        %971 = vmatprep.subr.bf16.mxu0 0
        %972 = vmatpush1.bf16.msra.mxu0 0
        %973 = vmatprep.subr.bf16.mxu0 0
        %974 = vmatpush1.bf16.msra.mxu0 0
        %975 = vmatprep.subr.bf16.mxu0 0
        %976 = vmatpush1.bf16.msra.mxu0 0
        %977 = vmatprep.subr.bf16.mxu0 0
        %978 = vmatpush1.bf16.msra.mxu0 0
        %979 = vmatprep.subr.bf16.mxu0 0
        %980 = vmatpush1.bf16.msra.mxu0 0
        %981 = vmatprep.subr.bf16.mxu0 0
        %982 = vmatpush1.bf16.msra.mxu0 0
        %983 = vmatprep.subr.bf16.mxu0 0
        %984 = vmatpush1.bf16.msra.mxu0 0
        %985 = vmatprep.subr.bf16.mxu0 0
        %986 = vmatpush1.bf16.msra.mxu0 0
        %987 = vmatprep.subr.bf16.mxu0 0
        %988 = vmatpush1.bf16.msra.mxu0 0
        %989 = vmatprep.subr.bf16.mxu0 0
        %990 = vmatpush1.bf16.msra.mxu0 0
        %991 = vmatprep.subr.bf16.mxu0 0
        %992 = vmatpush1.bf16.msra.mxu0 0
        %993 = vmatprep.mubr.bf16.mxu0 0
        %994 = vmatmul.mubr.bf16.gmra.mrb[0].mxu0 %v955
        %v995 = vpop.f32.mrb[0].mxu0
        %v996 = vadd.f32 0.0, %v995
        %v997 = vpop.f32.mrb[0].mxu0
        %v998 = vpop.f32.mrb[0].mxu0
        %v999 = vpop.f32.mrb[0].mxu0
        %1000 = vdwg.mxu0
        %1001 = vrot.lane.b32.xlu0 %v824, 64
        %v1002 = vpop.permute.xlu0 %1001
        %v1004 = vsel %vm833, %v951, 0
        %v1007 = vsel %vm957, %v1002, 0
        %1009 = vmatprep.subr.bf16.mxu0 0
        %1010 = vmatpush1.bf16.msra.mxu0 %v1007
        %1011 = vmatprep.subr.bf16.mxu0 0
        %1012 = vmatpush1.bf16.msra.mxu0 0
        %1013 = vmatprep.subr.bf16.mxu0 0
        %1014 = vmatpush1.bf16.msra.mxu0 0
        %1015 = vmatprep.subr.bf16.mxu0 0
        %1016 = vmatpush1.bf16.msra.mxu0 0
        %1017 = vmatprep.subr.bf16.mxu0 0
        %1018 = vmatpush1.bf16.msra.mxu0 0
        %1019 = vmatprep.subr.bf16.mxu0 0
        %1020 = vmatpush1.bf16.msra.mxu0 0
        %1021 = vmatprep.subr.bf16.mxu0 0
        %1022 = vmatpush1.bf16.msra.mxu0 0
        %1023 = vmatprep.subr.bf16.mxu0 0
        %1024 = vmatpush1.bf16.msra.mxu0 0
        %1025 = vmatprep.subr.bf16.mxu0 0
        %1026 = vmatpush1.bf16.msra.mxu0 0
        %1027 = vmatprep.subr.bf16.mxu0 0
        %1028 = vmatpush1.bf16.msra.mxu0 0
        %1029 = vmatprep.subr.bf16.mxu0 0
        %1030 = vmatpush1.bf16.msra.mxu0 0
        %1031 = vmatprep.subr.bf16.mxu0 0
        %1032 = vmatpush1.bf16.msra.mxu0 0
        %1033 = vmatprep.subr.bf16.mxu0 0
        %1034 = vmatpush1.bf16.msra.mxu0 0
        %1035 = vmatprep.subr.bf16.mxu0 0
        %1036 = vmatpush1.bf16.msra.mxu0 0
        %1037 = vmatprep.subr.bf16.mxu0 0
        %1038 = vmatpush1.bf16.msra.mxu0 0
        %1039 = vmatprep.subr.bf16.mxu0 0
        %1040 = vmatpush1.bf16.msra.mxu0 0
        %1041 = vmatprep.mubr.bf16.mxu0 0
        %1042 = vmatmul.mubr.bf16.gmra.mrb[0].mxu0 %v1004
        %v1043 = vpop.f32.mrb[0].mxu0
        %v1044 = vadd.f32 0.0, %v1043
        %v1045 = vpop.f32.mrb[0].mxu0
        %v1046 = vpop.f32.mrb[0].mxu0
        %v1047 = vpop.f32.mrb[0].mxu0
        %1048 = vdwg.mxu0
        %v1049 = vpack.c.bf16 %v1044, %v996
        %v1050 = vld [vmem:[%s666] sm:$0xf]
        %1051 = vrot.lane.b32.xlu0 %v823, 120
        %v1052 = vpop.permute.xlu0 %1051
        %1053 = vrot.lane.b32.xlu0 %v823, 88
        %v1054 = vpop.permute.xlu0 %1053
        %v1056 = vsel %vm833, %v1052, 0
        %v1059 = vsel %vm833, %v1054, 0
        %1061 = vmatprep.subr.bf16.mxu0 0
        %1062 = vmatpush1.bf16.xpose.msra.mxu0 %v1059
        %1063 = vmatprep.subr.bf16.mxu0 0
        %1064 = vmatpush1.bf16.xpose.msra.mxu0 0
        %1065 = vmatprep.subr.bf16.mxu0 0
        %1066 = vmatpush1.bf16.xpose.msra.mxu0 0
        %1067 = vmatprep.subr.bf16.mxu0 0
        %1068 = vmatpush1.bf16.xpose.msra.mxu0 0
        %1069 = vmatprep.subr.bf16.mxu0 0
        %1070 = vmatpush1.bf16.xpose.msra.mxu0 0
        %1071 = vmatprep.subr.bf16.mxu0 0
        %1072 = vmatpush1.bf16.xpose.msra.mxu0 0
        %1073 = vmatprep.subr.bf16.mxu0 0
        %1074 = vmatpush1.bf16.xpose.msra.mxu0 0
        %1075 = vmatprep.subr.bf16.mxu0 0
        %1076 = vmatpush1.bf16.xpose.msra.mxu0 0
        %1077 = vmatprep.subr.bf16.mxu0 0
        %1078 = vmatpush1.bf16.xpose.msra.mxu0 0
        %1079 = vmatprep.subr.bf16.mxu0 0
        %1080 = vmatpush1.bf16.xpose.msra.mxu0 0
        %1081 = vmatprep.subr.bf16.mxu0 0
        %1082 = vmatpush1.bf16.xpose.msra.mxu0 0
        %1083 = vmatprep.subr.bf16.mxu0 0
        %1084 = vmatpush1.bf16.xpose.msra.mxu0 0
        %1085 = vmatprep.subr.bf16.mxu0 0
        %1086 = vmatpush1.bf16.xpose.msra.mxu0 0
        %1087 = vmatprep.subr.bf16.mxu0 0
        %1088 = vmatpush1.bf16.xpose.msra.mxu0 0
        %1089 = vmatprep.subr.bf16.mxu0 0
        %1090 = vmatpush1.bf16.xpose.msra.mxu0 0
        %1091 = vmatprep.subr.bf16.mxu0 0
        %1092 = vmatpush1.bf16.xpose.msra.mxu0 0
        %1093 = vmatprep.mubr.bf16.mxu0 0
        %1094 = vmatmul.mubr.bf16.gmra.mrb[0].mxu0 %v1056
        %v1095 = vpop.f32.mrb[0].mxu0
        %v1096 = vadd.f32 %v830, %v1095
        %v1097 = vpop.f32.mrb[0].mxu0
        %v1098 = vpop.f32.mrb[0].mxu0
        %v1099 = vpop.f32.mrb[0].mxu0
        %1100 = vdwg.mxu0
        %1101 = vrot.lane.b32.xlu0 %v824, 120
        %v1102 = vpop.permute.xlu0 %1101
        %1103 = vrot.lane.b32.xlu0 %v824, 88
        %v1104 = vpop.permute.xlu0 %1103
        %v1106 = vsel %vm833, %v1102, 0
        %v1109 = vsel %vm833, %v1104, 0
        %1111 = vmatprep.subr.bf16.mxu0 0
        %1112 = vmatpush1.bf16.xpose.msra.mxu0 %v1109
        %1113 = vmatprep.subr.bf16.mxu0 0
        %1114 = vmatpush1.bf16.xpose.msra.mxu0 0
        %1115 = vmatprep.subr.bf16.mxu0 0
        %1116 = vmatpush1.bf16.xpose.msra.mxu0 0
        %1117 = vmatprep.subr.bf16.mxu0 0
        %1118 = vmatpush1.bf16.xpose.msra.mxu0 0
        %1119 = vmatprep.subr.bf16.mxu0 0
        %1120 = vmatpush1.bf16.xpose.msra.mxu0 0
        %1121 = vmatprep.subr.bf16.mxu0 0
        %1122 = vmatpush1.bf16.xpose.msra.mxu0 0
        %1123 = vmatprep.subr.bf16.mxu0 0
        %1124 = vmatpush1.bf16.xpose.msra.mxu0 0
        %1125 = vmatprep.subr.bf16.mxu0 0
        %1126 = vmatpush1.bf16.xpose.msra.mxu0 0
        %1127 = vmatprep.subr.bf16.mxu0 0
        %1128 = vmatpush1.bf16.xpose.msra.mxu0 0
        %1129 = vmatprep.subr.bf16.mxu0 0
        %1130 = vmatpush1.bf16.xpose.msra.mxu0 0
        %1131 = vmatprep.subr.bf16.mxu0 0
        %1132 = vmatpush1.bf16.xpose.msra.mxu0 0
        %1133 = vmatprep.subr.bf16.mxu0 0
        %1134 = vmatpush1.bf16.xpose.msra.mxu0 0
        %1135 = vmatprep.subr.bf16.mxu0 0
        %1136 = vmatpush1.bf16.xpose.msra.mxu0 0
        %1137 = vmatprep.subr.bf16.mxu0 0
        %1138 = vmatpush1.bf16.xpose.msra.mxu0 0
        %1139 = vmatprep.subr.bf16.mxu0 0
        %1140 = vmatpush1.bf16.xpose.msra.mxu0 0
        %1141 = vmatprep.subr.bf16.mxu0 0
        %1142 = vmatpush1.bf16.xpose.msra.mxu0 0
        %1143 = vmatprep.mubr.bf16.mxu0 0
        %1144 = vmatmul.mubr.bf16.gmra.mrb[0].mxu0 %v1106
        %v1145 = vpop.f32.mrb[0].mxu0
        %v1146 = vadd.f32 %v830, %v1145
        %v1147 = vpop.f32.mrb[0].mxu0
        %v1148 = vpop.f32.mrb[0].mxu0
        %v1149 = vpop.f32.mrb[0].mxu0
        %1150 = vdwg.mxu0
        %v1151 = vsel %vm833, %v1096, -inf
        %1152 = vmax.xlane.f32.xlu0 %v1151
        %v1153 = vpop.xlane.xlu0 %1152
        %v1154 = vsel %vm833, %v1146, -inf
        %1155 = vmax.xlane.f32.xlu0 %v1154
        %v1156 = vpop.xlane.xlu0 %1155
        %v1157 = vsub.f32 %v1096, %v1153
        %v1158 = vsub.f32 %v1146, %v1156
        %v1159 = vmul.f32 %v1157, 1.442695
        %v1160 = vpow.pop %v1159
        %v1161 = vmul.f32 %v1158, 1.442695
        %v1162 = vpow.pop %v1161
        %v1163 = vsel %vm833, %v1160, 0.0
        %1164 = vadd.xlane.f32.xlu0 %v1163
        %v1165 = vpop.xlane.xlu0 %1164
        %v1166 = vsel %vm833, %v1162, 0.0
        %1167 = vadd.xlane.f32.xlu0 %v1166
        %v1168 = vpop.xlane.xlu0 %1167
        %v1169 = vrcp.pop %v1165
        %v1170 = vrcp.pop %v1168
        %v1171 = vmul.f32 %v1160, %v1169
        %v1172 = vmul.f32 %v1162, %v1170
        %v1173 = vpack.c.bf16 %v1171, %v1171
        %v1174 = vpack.c.bf16 %v1172, %v1172
        %1175 = vrot.lane.b32.xlu0 %v823, 56
        %v1176 = vpop.permute.xlu0 %1175
        %v1178 = vsel %vm833, %v1173, 0
        %v1181 = vsel %vm957, %v1176, 0
        %1183 = vmatprep.subr.bf16.mxu0 0
        %1184 = vmatpush1.bf16.msra.mxu0 %v1181
        %1185 = vmatprep.subr.bf16.mxu0 0
        %1186 = vmatpush1.bf16.msra.mxu0 0
        %1187 = vmatprep.subr.bf16.mxu0 0
        %1188 = vmatpush1.bf16.msra.mxu0 0
        %1189 = vmatprep.subr.bf16.mxu0 0
        %1190 = vmatpush1.bf16.msra.mxu0 0
        %1191 = vmatprep.subr.bf16.mxu0 0
        %1192 = vmatpush1.bf16.msra.mxu0 0
        %1193 = vmatprep.subr.bf16.mxu0 0
        %1194 = vmatpush1.bf16.msra.mxu0 0
        %1195 = vmatprep.subr.bf16.mxu0 0
        %1196 = vmatpush1.bf16.msra.mxu0 0
        %1197 = vmatprep.subr.bf16.mxu0 0
        %1198 = vmatpush1.bf16.msra.mxu0 0
        %1199 = vmatprep.subr.bf16.mxu0 0
        %1200 = vmatpush1.bf16.msra.mxu0 0
        %1201 = vmatprep.subr.bf16.mxu0 0
        %1202 = vmatpush1.bf16.msra.mxu0 0
        %1203 = vmatprep.subr.bf16.mxu0 0
        %1204 = vmatpush1.bf16.msra.mxu0 0
        %1205 = vmatprep.subr.bf16.mxu0 0
        %1206 = vmatpush1.bf16.msra.mxu0 0
        %1207 = vmatprep.subr.bf16.mxu0 0
        %1208 = vmatpush1.bf16.msra.mxu0 0
        %1209 = vmatprep.subr.bf16.mxu0 0
        %1210 = vmatpush1.bf16.msra.mxu0 0
        %1211 = vmatprep.subr.bf16.mxu0 0
        %1212 = vmatpush1.bf16.msra.mxu0 0
        %1213 = vmatprep.subr.bf16.mxu0 0
        %1214 = vmatpush1.bf16.msra.mxu0 0
        %1215 = vmatprep.mubr.bf16.mxu0 0
        %1216 = vmatmul.mubr.bf16.gmra.mrb[0].mxu0 %v1178
        %v1217 = vpop.f32.mrb[0].mxu0
        %v1218 = vadd.f32 0.0, %v1217
        %v1219 = vpop.f32.mrb[0].mxu0
        %v1220 = vpop.f32.mrb[0].mxu0
        %v1221 = vpop.f32.mrb[0].mxu0
        %1222 = vdwg.mxu0
        %1223 = vrot.lane.b32.xlu0 %v824, 56
        %v1224 = vpop.permute.xlu0 %1223
        %v1226 = vsel %vm833, %v1174, 0
        %v1229 = vsel %vm957, %v1224, 0
        %1231 = vmatprep.subr.bf16.mxu0 0
        %1232 = vmatpush1.bf16.msra.mxu0 %v1229
        %1233 = vmatprep.subr.bf16.mxu0 0
        %1234 = vmatpush1.bf16.msra.mxu0 0
        %1235 = vmatprep.subr.bf16.mxu0 0
        %1236 = vmatpush1.bf16.msra.mxu0 0
        %1237 = vmatprep.subr.bf16.mxu0 0
        %1238 = vmatpush1.bf16.msra.mxu0 0
        %1239 = vmatprep.subr.bf16.mxu0 0
        %1240 = vmatpush1.bf16.msra.mxu0 0
        %1241 = vmatprep.subr.bf16.mxu0 0
        %1242 = vmatpush1.bf16.msra.mxu0 0
        %1243 = vmatprep.subr.bf16.mxu0 0
        %1244 = vmatpush1.bf16.msra.mxu0 0
        %1245 = vmatprep.subr.bf16.mxu0 0
        %1246 = vmatpush1.bf16.msra.mxu0 0
        %1247 = vmatprep.subr.bf16.mxu0 0
        %1248 = vmatpush1.bf16.msra.mxu0 0
        %1249 = vmatprep.subr.bf16.mxu0 0
        %1250 = vmatpush1.bf16.msra.mxu0 0
        %1251 = vmatprep.subr.bf16.mxu0 0
        %1252 = vmatpush1.bf16.msra.mxu0 0
        %1253 = vmatprep.subr.bf16.mxu0 0
        %1254 = vmatpush1.bf16.msra.mxu0 0
        %1255 = vmatprep.subr.bf16.mxu0 0
        %1256 = vmatpush1.bf16.msra.mxu0 0
        %1257 = vmatprep.subr.bf16.mxu0 0
        %1258 = vmatpush1.bf16.msra.mxu0 0
        %1259 = vmatprep.subr.bf16.mxu0 0
        %1260 = vmatpush1.bf16.msra.mxu0 0
        %1261 = vmatprep.subr.bf16.mxu0 0
        %1262 = vmatpush1.bf16.msra.mxu0 0
        %1263 = vmatprep.mubr.bf16.mxu0 0
        %1264 = vmatmul.mubr.bf16.gmra.mrb[0].mxu0 %v1226
        %v1265 = vpop.f32.mrb[0].mxu0
        %v1266 = vadd.f32 0.0, %v1265
        %v1267 = vpop.f32.mrb[0].mxu0
        %v1268 = vpop.f32.mrb[0].mxu0
        %v1269 = vpop.f32.mrb[0].mxu0
        %1270 = vdwg.mxu0
        %v1271 = vpack.c.bf16 %v1266, %v1218
        %v1272 = vld [vmem:[%s666 + $0x4] sm:$0xf]
        %v1274 = vsel %vm833, %v1271, 0
        %v1277 = vsel %vm957, %v1272, 0
        %1279 = vmatprep.subr.bf16.mxu0 0
        %1280 = vmatpush1.bf16.msra.mxu0 %v1277
        %1281 = vmatprep.subr.bf16.mxu0 0
        %1282 = vmatpush1.bf16.msra.mxu0 0
        %1283 = vmatprep.subr.bf16.mxu0 0
        %1284 = vmatpush1.bf16.msra.mxu0 0
        %1285 = vmatprep.subr.bf16.mxu0 0
        %1286 = vmatpush1.bf16.msra.mxu0 0
        %1287 = vmatprep.subr.bf16.mxu0 0
        %1288 = vmatpush1.bf16.msra.mxu0 0
        %1289 = vmatprep.subr.bf16.mxu0 0
        %1290 = vmatpush1.bf16.msra.mxu0 0
        %1291 = vmatprep.subr.bf16.mxu0 0
        %1292 = vmatpush1.bf16.msra.mxu0 0
        %1293 = vmatprep.subr.bf16.mxu0 0
        %1294 = vmatpush1.bf16.msra.mxu0 0
        %1295 = vmatprep.subr.bf16.mxu0 0
        %1296 = vmatpush1.bf16.msra.mxu0 0
        %1297 = vmatprep.subr.bf16.mxu0 0
        %1298 = vmatpush1.bf16.msra.mxu0 0
        %1299 = vmatprep.subr.bf16.mxu0 0
        %1300 = vmatpush1.bf16.msra.mxu0 0
        %1301 = vmatprep.subr.bf16.mxu0 0
        %1302 = vmatpush1.bf16.msra.mxu0 0
        %1303 = vmatprep.subr.bf16.mxu0 0
        %1304 = vmatpush1.bf16.msra.mxu0 0
        %1305 = vmatprep.subr.bf16.mxu0 0
        %1306 = vmatpush1.bf16.msra.mxu0 0
        %1307 = vmatprep.subr.bf16.mxu0 0
        %1308 = vmatpush1.bf16.msra.mxu0 0
        %1309 = vmatprep.subr.bf16.mxu0 0
        %1310 = vmatpush1.bf16.msra.mxu0 0
        %1311 = vmatprep.mubr.bf16.mxu0 0
        %1312 = vmatmul.mubr.bf16.gmra.mrb[0].mxu0 %v1274
        %v1313 = vpop.f32.mrb[0].mxu0
        %v1314 = vadd.f32 0.0, %v1313
        %v1315 = vpop.f32.mrb[0].mxu0
        %v1316 = vpop.f32.mrb[0].mxu0
        %v1317 = vadd.f32 0.0, %v1316
        %v1318 = vpop.f32.mrb[0].mxu0
        %1319 = vdwg.mxu0
        %v1321 = vsel %vm833, %v1049, 0
        %v1324 = vsel %vm957, %v1050, 0
        %1326 = vmatprep.subr.bf16.mxu0 0
        %1327 = vmatpush1.bf16.msra.mxu0 %v1324
        %1328 = vmatprep.subr.bf16.mxu0 0
        %1329 = vmatpush1.bf16.msra.mxu0 0
        %1330 = vmatprep.subr.bf16.mxu0 0
        %1331 = vmatpush1.bf16.msra.mxu0 0
        %1332 = vmatprep.subr.bf16.mxu0 0
        %1333 = vmatpush1.bf16.msra.mxu0 0
        %1334 = vmatprep.subr.bf16.mxu0 0
        %1335 = vmatpush1.bf16.msra.mxu0 0
        %1336 = vmatprep.subr.bf16.mxu0 0
        %1337 = vmatpush1.bf16.msra.mxu0 0
        %1338 = vmatprep.subr.bf16.mxu0 0
        %1339 = vmatpush1.bf16.msra.mxu0 0
        %1340 = vmatprep.subr.bf16.mxu0 0
        %1341 = vmatpush1.bf16.msra.mxu0 0
        %1342 = vmatprep.subr.bf16.mxu0 0
        %1343 = vmatpush1.bf16.msra.mxu0 0
        %1344 = vmatprep.subr.bf16.mxu0 0
        %1345 = vmatpush1.bf16.msra.mxu0 0
        %1346 = vmatprep.subr.bf16.mxu0 0
        %1347 = vmatpush1.bf16.msra.mxu0 0
        %1348 = vmatprep.subr.bf16.mxu0 0
        %1349 = vmatpush1.bf16.msra.mxu0 0
        %1350 = vmatprep.subr.bf16.mxu0 0
        %1351 = vmatpush1.bf16.msra.mxu0 0
        %1352 = vmatprep.subr.bf16.mxu0 0
        %1353 = vmatpush1.bf16.msra.mxu0 0
        %1354 = vmatprep.subr.bf16.mxu0 0
        %1355 = vmatpush1.bf16.msra.mxu0 0
        %1356 = vmatprep.subr.bf16.mxu0 0
        %1357 = vmatpush1.bf16.msra.mxu0 0
        %1358 = vmatprep.mubr.bf16.mxu0 0
        %1359 = vmatmul.mubr.bf16.gmra.mrb[0].mxu0 %v1321
        %v1360 = vpop.f32.mrb[0].mxu0
        %v1361 = vadd.f32 %v1314, %v1360
        %v1362 = vpop.f32.mrb[0].mxu0
        %v1363 = vpop.f32.mrb[0].mxu0
        %v1364 = vadd.f32 %v1317, %v1363
        %v1365 = vpop.f32.mrb[0].mxu0
        %1366 = vdwg.mxu0
        %1367 = vrot.lane.b32.xlu0 %v823, 112
        %v1368 = vpop.permute.xlu0 %1367
        %1369 = vrot.lane.b32.xlu0 %v823, 80
        %v1370 = vpop.permute.xlu0 %1369
        %v1372 = vsel %vm833, %v1368, 0
        %v1375 = vsel %vm833, %v1370, 0
        %1377 = vmatprep.subr.bf16.mxu0 0
        %1378 = vmatpush1.bf16.xpose.msra.mxu0 %v1375
        %1379 = vmatprep.subr.bf16.mxu0 0
        %1380 = vmatpush1.bf16.xpose.msra.mxu0 0
        %1381 = vmatprep.subr.bf16.mxu0 0
        %1382 = vmatpush1.bf16.xpose.msra.mxu0 0
        %1383 = vmatprep.subr.bf16.mxu0 0
        %1384 = vmatpush1.bf16.xpose.msra.mxu0 0
        %1385 = vmatprep.subr.bf16.mxu0 0
        %1386 = vmatpush1.bf16.xpose.msra.mxu0 0
        %1387 = vmatprep.subr.bf16.mxu0 0
        %1388 = vmatpush1.bf16.xpose.msra.mxu0 0
        %1389 = vmatprep.subr.bf16.mxu0 0
        %1390 = vmatpush1.bf16.xpose.msra.mxu0 0
        %1391 = vmatprep.subr.bf16.mxu0 0
        %1392 = vmatpush1.bf16.xpose.msra.mxu0 0
        %1393 = vmatprep.subr.bf16.mxu0 0
        %1394 = vmatpush1.bf16.xpose.msra.mxu0 0
        %1395 = vmatprep.subr.bf16.mxu0 0
        %1396 = vmatpush1.bf16.xpose.msra.mxu0 0
        %1397 = vmatprep.subr.bf16.mxu0 0
        %1398 = vmatpush1.bf16.xpose.msra.mxu0 0
        %1399 = vmatprep.subr.bf16.mxu0 0
        %1400 = vmatpush1.bf16.xpose.msra.mxu0 0
        %1401 = vmatprep.subr.bf16.mxu0 0
        %1402 = vmatpush1.bf16.xpose.msra.mxu0 0
        %1403 = vmatprep.subr.bf16.mxu0 0
        %1404 = vmatpush1.bf16.xpose.msra.mxu0 0
        %1405 = vmatprep.subr.bf16.mxu0 0
        %1406 = vmatpush1.bf16.xpose.msra.mxu0 0
        %1407 = vmatprep.subr.bf16.mxu0 0
        %1408 = vmatpush1.bf16.xpose.msra.mxu0 0
        %1409 = vmatprep.mubr.bf16.mxu0 0
        %1410 = vmatmul.mubr.bf16.gmra.mrb[0].mxu0 %v1372
        %v1411 = vpop.f32.mrb[0].mxu0
        %v1412 = vadd.f32 %v830, %v1411
        %v1413 = vpop.f32.mrb[0].mxu0
        %v1414 = vpop.f32.mrb[0].mxu0
        %v1415 = vpop.f32.mrb[0].mxu0
        %1416 = vdwg.mxu0
        %1417 = vrot.lane.b32.xlu0 %v824, 112
        %v1418 = vpop.permute.xlu0 %1417
        %1419 = vrot.lane.b32.xlu0 %v824, 80
        %v1420 = vpop.permute.xlu0 %1419
        %v1422 = vsel %vm833, %v1418, 0
        %v1425 = vsel %vm833, %v1420, 0
        %1427 = vmatprep.subr.bf16.mxu0 0
        %1428 = vmatpush1.bf16.xpose.msra.mxu0 %v1425
        %1429 = vmatprep.subr.bf16.mxu0 0
        %1430 = vmatpush1.bf16.xpose.msra.mxu0 0
        %1431 = vmatprep.subr.bf16.mxu0 0
        %1432 = vmatpush1.bf16.xpose.msra.mxu0 0
        %1433 = vmatprep.subr.bf16.mxu0 0
        %1434 = vmatpush1.bf16.xpose.msra.mxu0 0
        %1435 = vmatprep.subr.bf16.mxu0 0
        %1436 = vmatpush1.bf16.xpose.msra.mxu0 0
        %1437 = vmatprep.subr.bf16.mxu0 0
        %1438 = vmatpush1.bf16.xpose.msra.mxu0 0
        %1439 = vmatprep.subr.bf16.mxu0 0
        %1440 = vmatpush1.bf16.xpose.msra.mxu0 0
        %1441 = vmatprep.subr.bf16.mxu0 0
        %1442 = vmatpush1.bf16.xpose.msra.mxu0 0
        %1443 = vmatprep.subr.bf16.mxu0 0
        %1444 = vmatpush1.bf16.xpose.msra.mxu0 0
        %1445 = vmatprep.subr.bf16.mxu0 0
        %1446 = vmatpush1.bf16.xpose.msra.mxu0 0
        %1447 = vmatprep.subr.bf16.mxu0 0
        %1448 = vmatpush1.bf16.xpose.msra.mxu0 0
        %1449 = vmatprep.subr.bf16.mxu0 0
        %1450 = vmatpush1.bf16.xpose.msra.mxu0 0
        %1451 = vmatprep.subr.bf16.mxu0 0
        %1452 = vmatpush1.bf16.xpose.msra.mxu0 0
        %1453 = vmatprep.subr.bf16.mxu0 0
        %1454 = vmatpush1.bf16.xpose.msra.mxu0 0
        %1455 = vmatprep.subr.bf16.mxu0 0
        %1456 = vmatpush1.bf16.xpose.msra.mxu0 0
        %1457 = vmatprep.subr.bf16.mxu0 0
        %1458 = vmatpush1.bf16.xpose.msra.mxu0 0
        %1459 = vmatprep.mubr.bf16.mxu0 0
        %1460 = vmatmul.mubr.bf16.gmra.mrb[0].mxu0 %v1422
        %v1461 = vpop.f32.mrb[0].mxu0
        %v1462 = vadd.f32 %v830, %v1461
        %v1463 = vpop.f32.mrb[0].mxu0
        %v1464 = vpop.f32.mrb[0].mxu0
        %v1465 = vpop.f32.mrb[0].mxu0
        %1466 = vdwg.mxu0
        %v1467 = vsel %vm833, %v1412, -inf
        %1468 = vmax.xlane.f32.xlu0 %v1467
        %v1469 = vpop.xlane.xlu0 %1468
        %v1470 = vsel %vm833, %v1462, -inf
        %1471 = vmax.xlane.f32.xlu0 %v1470
        %v1472 = vpop.xlane.xlu0 %1471
        %v1473 = vsub.f32 %v1412, %v1469
        %v1474 = vsub.f32 %v1462, %v1472
        %v1475 = vmul.f32 %v1473, 1.442695
        %v1476 = vpow.pop %v1475
        %v1477 = vmul.f32 %v1474, 1.442695
        %v1478 = vpow.pop %v1477
        %v1479 = vsel %vm833, %v1476, 0.0
        %1480 = vadd.xlane.f32.xlu0 %v1479
        %v1481 = vpop.xlane.xlu0 %1480
        %v1482 = vsel %vm833, %v1478, 0.0
        %1483 = vadd.xlane.f32.xlu0 %v1482
        %v1484 = vpop.xlane.xlu0 %1483
        %v1485 = vrcp.pop %v1481
        %v1486 = vrcp.pop %v1484
        %v1487 = vmul.f32 %v1476, %v1485
        %v1488 = vmul.f32 %v1478, %v1486
        %v1489 = vpack.c.bf16 %v1487, %v1487
        %v1490 = vpack.c.bf16 %v1488, %v1488
        %1491 = vrot.lane.b32.xlu0 %v823, 48
        %v1492 = vpop.permute.xlu0 %1491
        %v1494 = vsel %vm833, %v1489, 0
        %v1497 = vsel %vm957, %v1492, 0
        %1499 = vmatprep.subr.bf16.mxu0 0
        %1500 = vmatpush1.bf16.msra.mxu0 %v1497
        %1501 = vmatprep.subr.bf16.mxu0 0
        %1502 = vmatpush1.bf16.msra.mxu0 0
        %1503 = vmatprep.subr.bf16.mxu0 0
        %1504 = vmatpush1.bf16.msra.mxu0 0
        %1505 = vmatprep.subr.bf16.mxu0 0
        %1506 = vmatpush1.bf16.msra.mxu0 0
        %1507 = vmatprep.subr.bf16.mxu0 0
        %1508 = vmatpush1.bf16.msra.mxu0 0
        %1509 = vmatprep.subr.bf16.mxu0 0
        %1510 = vmatpush1.bf16.msra.mxu0 0
        %1511 = vmatprep.subr.bf16.mxu0 0
        %1512 = vmatpush1.bf16.msra.mxu0 0
        %1513 = vmatprep.subr.bf16.mxu0 0
        %1514 = vmatpush1.bf16.msra.mxu0 0
        %1515 = vmatprep.subr.bf16.mxu0 0
        %1516 = vmatpush1.bf16.msra.mxu0 0
        %1517 = vmatprep.subr.bf16.mxu0 0
        %1518 = vmatpush1.bf16.msra.mxu0 0
        %1519 = vmatprep.subr.bf16.mxu0 0
        %1520 = vmatpush1.bf16.msra.mxu0 0
        %1521 = vmatprep.subr.bf16.mxu0 0
        %1522 = vmatpush1.bf16.msra.mxu0 0
        %1523 = vmatprep.subr.bf16.mxu0 0
        %1524 = vmatpush1.bf16.msra.mxu0 0
        %1525 = vmatprep.subr.bf16.mxu0 0
        %1526 = vmatpush1.bf16.msra.mxu0 0
        %1527 = vmatprep.subr.bf16.mxu0 0
        %1528 = vmatpush1.bf16.msra.mxu0 0
        %1529 = vmatprep.subr.bf16.mxu0 0
        %1530 = vmatpush1.bf16.msra.mxu0 0
        %1531 = vmatprep.mubr.bf16.mxu0 0
        %1532 = vmatmul.mubr.bf16.gmra.mrb[0].mxu0 %v1494
        %v1533 = vpop.f32.mrb[0].mxu0
        %v1534 = vadd.f32 0.0, %v1533
        %v1535 = vpop.f32.mrb[0].mxu0
        %v1536 = vpop.f32.mrb[0].mxu0
        %v1537 = vpop.f32.mrb[0].mxu0
        %1538 = vdwg.mxu0
        %1539 = vrot.lane.b32.xlu0 %v824, 48
        %v1540 = vpop.permute.xlu0 %1539
        %v1542 = vsel %vm833, %v1490, 0
        %v1545 = vsel %vm957, %v1540, 0
        %1547 = vmatprep.subr.bf16.mxu0 0
        %1548 = vmatpush1.bf16.msra.mxu0 %v1545
        %1549 = vmatprep.subr.bf16.mxu0 0
        %1550 = vmatpush1.bf16.msra.mxu0 0
        %1551 = vmatprep.subr.bf16.mxu0 0
        %1552 = vmatpush1.bf16.msra.mxu0 0
        %1553 = vmatprep.subr.bf16.mxu0 0
        %1554 = vmatpush1.bf16.msra.mxu0 0
        %1555 = vmatprep.subr.bf16.mxu0 0
        %1556 = vmatpush1.bf16.msra.mxu0 0
        %1557 = vmatprep.subr.bf16.mxu0 0
        %1558 = vmatpush1.bf16.msra.mxu0 0
        %1559 = vmatprep.subr.bf16.mxu0 0
        %1560 = vmatpush1.bf16.msra.mxu0 0
        %1561 = vmatprep.subr.bf16.mxu0 0
        %1562 = vmatpush1.bf16.msra.mxu0 0
        %1563 = vmatprep.subr.bf16.mxu0 0
        %1564 = vmatpush1.bf16.msra.mxu0 0
        %1565 = vmatprep.subr.bf16.mxu0 0
        %1566 = vmatpush1.bf16.msra.mxu0 0
        %1567 = vmatprep.subr.bf16.mxu0 0
        %1568 = vmatpush1.bf16.msra.mxu0 0
        %1569 = vmatprep.subr.bf16.mxu0 0
        %1570 = vmatpush1.bf16.msra.mxu0 0
        %1571 = vmatprep.subr.bf16.mxu0 0
        %1572 = vmatpush1.bf16.msra.mxu0 0
        %1573 = vmatprep.subr.bf16.mxu0 0
        %1574 = vmatpush1.bf16.msra.mxu0 0
        %1575 = vmatprep.subr.bf16.mxu0 0
        %1576 = vmatpush1.bf16.msra.mxu0 0
        %1577 = vmatprep.subr.bf16.mxu0 0
        %1578 = vmatpush1.bf16.msra.mxu0 0
        %1579 = vmatprep.mubr.bf16.mxu0 0
        %1580 = vmatmul.mubr.bf16.gmra.mrb[0].mxu0 %v1542
        %v1581 = vpop.f32.mrb[0].mxu0
        %v1582 = vadd.f32 0.0, %v1581
        %v1583 = vpop.f32.mrb[0].mxu0
        %v1584 = vpop.f32.mrb[0].mxu0
        %v1585 = vpop.f32.mrb[0].mxu0
        %1586 = vdwg.mxu0
        %v1587 = vpack.c.bf16 %v1582, %v1534
        %v1588 = vld [vmem:[%s666 + $0x8] sm:$0xf]
        %v1590 = vsel %vm833, %v1587, 0
        %v1593 = vsel %vm957, %v1588, 0
        %1595 = vmatprep.subr.bf16.mxu0 0
        %1596 = vmatpush1.bf16.msra.mxu0 %v1593
        %1597 = vmatprep.subr.bf16.mxu0 0
        %1598 = vmatpush1.bf16.msra.mxu0 0
        %1599 = vmatprep.subr.bf16.mxu0 0
        %1600 = vmatpush1.bf16.msra.mxu0 0
        %1601 = vmatprep.subr.bf16.mxu0 0
        %1602 = vmatpush1.bf16.msra.mxu0 0
        %1603 = vmatprep.subr.bf16.mxu0 0
        %1604 = vmatpush1.bf16.msra.mxu0 0
        %1605 = vmatprep.subr.bf16.mxu0 0
        %1606 = vmatpush1.bf16.msra.mxu0 0
        %1607 = vmatprep.subr.bf16.mxu0 0
        %1608 = vmatpush1.bf16.msra.mxu0 0
        %1609 = vmatprep.subr.bf16.mxu0 0
        %1610 = vmatpush1.bf16.msra.mxu0 0
        %1611 = vmatprep.subr.bf16.mxu0 0
        %1612 = vmatpush1.bf16.msra.mxu0 0
        %1613 = vmatprep.subr.bf16.mxu0 0
        %1614 = vmatpush1.bf16.msra.mxu0 0
        %1615 = vmatprep.subr.bf16.mxu0 0
        %1616 = vmatpush1.bf16.msra.mxu0 0
        %1617 = vmatprep.subr.bf16.mxu0 0
        %1618 = vmatpush1.bf16.msra.mxu0 0
        %1619 = vmatprep.subr.bf16.mxu0 0
        %1620 = vmatpush1.bf16.msra.mxu0 0
        %1621 = vmatprep.subr.bf16.mxu0 0
        %1622 = vmatpush1.bf16.msra.mxu0 0
        %1623 = vmatprep.subr.bf16.mxu0 0
        %1624 = vmatpush1.bf16.msra.mxu0 0
        %1625 = vmatprep.subr.bf16.mxu0 0
        %1626 = vmatpush1.bf16.msra.mxu0 0
        %1627 = vmatprep.mubr.bf16.mxu0 0
        %1628 = vmatmul.mubr.bf16.gmra.mrb[0].mxu0 %v1590
        %v1629 = vpop.f32.mrb[0].mxu0
        %v1630 = vadd.f32 0.0, %v1629
        %v1631 = vpop.f32.mrb[0].mxu0
        %v1632 = vpop.f32.mrb[0].mxu0
        %v1633 = vadd.f32 0.0, %v1632
        %v1634 = vpop.f32.mrb[0].mxu0
        %1635 = vdwg.mxu0
        %v1636 = vadd.f32 %v1361, %v1630
        %v1637 = vadd.f32 %v1364, %v1633
        %1638 = vrot.lane.b32.xlu0 %v823, 104
        %v1639 = vpop.permute.xlu0 %1638
        %1640 = vrot.lane.b32.xlu0 %v823, 72
        %v1641 = vpop.permute.xlu0 %1640
        %v1643 = vsel %vm833, %v1639, 0
        %v1646 = vsel %vm833, %v1641, 0
        %1648 = vmatprep.subr.bf16.mxu0 0
        %1649 = vmatpush1.bf16.xpose.msra.mxu0 %v1646
        %1650 = vmatprep.subr.bf16.mxu0 0
        %1651 = vmatpush1.bf16.xpose.msra.mxu0 0
        %1652 = vmatprep.subr.bf16.mxu0 0
        %1653 = vmatpush1.bf16.xpose.msra.mxu0 0
        %1654 = vmatprep.subr.bf16.mxu0 0
        %1655 = vmatpush1.bf16.xpose.msra.mxu0 0
        %1656 = vmatprep.subr.bf16.mxu0 0
        %1657 = vmatpush1.bf16.xpose.msra.mxu0 0
        %1658 = vmatprep.subr.bf16.mxu0 0
        %1659 = vmatpush1.bf16.xpose.msra.mxu0 0
        %1660 = vmatprep.subr.bf16.mxu0 0
        %1661 = vmatpush1.bf16.xpose.msra.mxu0 0
        %1662 = vmatprep.subr.bf16.mxu0 0
        %1663 = vmatpush1.bf16.xpose.msra.mxu0 0
        %1664 = vmatprep.subr.bf16.mxu0 0
        %1665 = vmatpush1.bf16.xpose.msra.mxu0 0
        %1666 = vmatprep.subr.bf16.mxu0 0
        %1667 = vmatpush1.bf16.xpose.msra.mxu0 0
        %1668 = vmatprep.subr.bf16.mxu0 0
        %1669 = vmatpush1.bf16.xpose.msra.mxu0 0
        %1670 = vmatprep.subr.bf16.mxu0 0
        %1671 = vmatpush1.bf16.xpose.msra.mxu0 0
        %1672 = vmatprep.subr.bf16.mxu0 0
        %1673 = vmatpush1.bf16.xpose.msra.mxu0 0
        %1674 = vmatprep.subr.bf16.mxu0 0
        %1675 = vmatpush1.bf16.xpose.msra.mxu0 0
        %1676 = vmatprep.subr.bf16.mxu0 0
        %1677 = vmatpush1.bf16.xpose.msra.mxu0 0
        %1678 = vmatprep.subr.bf16.mxu0 0
        %1679 = vmatpush1.bf16.xpose.msra.mxu0 0
        %1680 = vmatprep.mubr.bf16.mxu0 0
        %1681 = vmatmul.mubr.bf16.gmra.mrb[0].mxu0 %v1643
        %v1682 = vpop.f32.mrb[0].mxu0
        %v1683 = vadd.f32 %v830, %v1682
        %v1684 = vpop.f32.mrb[0].mxu0
        %v1685 = vpop.f32.mrb[0].mxu0
        %v1686 = vpop.f32.mrb[0].mxu0
        %1687 = vdwg.mxu0
        %1688 = vrot.lane.b32.xlu0 %v824, 104
        %v1689 = vpop.permute.xlu0 %1688
        %1690 = vrot.lane.b32.xlu0 %v824, 72
        %v1691 = vpop.permute.xlu0 %1690
        %v1693 = vsel %vm833, %v1689, 0
        %v1696 = vsel %vm833, %v1691, 0
        %1698 = vmatprep.subr.bf16.mxu0 0
        %1699 = vmatpush1.bf16.xpose.msra.mxu0 %v1696
        %1700 = vmatprep.subr.bf16.mxu0 0
        %1701 = vmatpush1.bf16.xpose.msra.mxu0 0
        %1702 = vmatprep.subr.bf16.mxu0 0
        %1703 = vmatpush1.bf16.xpose.msra.mxu0 0
        %1704 = vmatprep.subr.bf16.mxu0 0
        %1705 = vmatpush1.bf16.xpose.msra.mxu0 0
        %1706 = vmatprep.subr.bf16.mxu0 0
        %1707 = vmatpush1.bf16.xpose.msra.mxu0 0
        %1708 = vmatprep.subr.bf16.mxu0 0
        %1709 = vmatpush1.bf16.xpose.msra.mxu0 0
        %1710 = vmatprep.subr.bf16.mxu0 0
        %1711 = vmatpush1.bf16.xpose.msra.mxu0 0
        %1712 = vmatprep.subr.bf16.mxu0 0
        %1713 = vmatpush1.bf16.xpose.msra.mxu0 0
        %1714 = vmatprep.subr.bf16.mxu0 0
        %1715 = vmatpush1.bf16.xpose.msra.mxu0 0
        %1716 = vmatprep.subr.bf16.mxu0 0
        %1717 = vmatpush1.bf16.xpose.msra.mxu0 0
        %1718 = vmatprep.subr.bf16.mxu0 0
        %1719 = vmatpush1.bf16.xpose.msra.mxu0 0
        %1720 = vmatprep.subr.bf16.mxu0 0
        %1721 = vmatpush1.bf16.xpose.msra.mxu0 0
        %1722 = vmatprep.subr.bf16.mxu0 0
        %1723 = vmatpush1.bf16.xpose.msra.mxu0 0
        %1724 = vmatprep.subr.bf16.mxu0 0
        %1725 = vmatpush1.bf16.xpose.msra.mxu0 0
        %1726 = vmatprep.subr.bf16.mxu0 0
        %1727 = vmatpush1.bf16.xpose.msra.mxu0 0
        %1728 = vmatprep.subr.bf16.mxu0 0
        %1729 = vmatpush1.bf16.xpose.msra.mxu0 0
        %1730 = vmatprep.mubr.bf16.mxu0 0
        %1731 = vmatmul.mubr.bf16.gmra.mrb[0].mxu0 %v1693
        %v1732 = vpop.f32.mrb[0].mxu0
        %v1733 = vadd.f32 %v830, %v1732
        %v1734 = vpop.f32.mrb[0].mxu0
        %v1735 = vpop.f32.mrb[0].mxu0
        %v1736 = vpop.f32.mrb[0].mxu0
        %1737 = vdwg.mxu0
        %v1738 = vsel %vm833, %v1683, -inf
        %1739 = vmax.xlane.f32.xlu0 %v1738
        %v1740 = vpop.xlane.xlu0 %1739
        %v1741 = vsel %vm833, %v1733, -inf
        %1742 = vmax.xlane.f32.xlu0 %v1741
        %v1743 = vpop.xlane.xlu0 %1742
        %v1744 = vsub.f32 %v1683, %v1740
        %v1745 = vsub.f32 %v1733, %v1743
        %v1746 = vmul.f32 %v1744, 1.442695
        %v1747 = vpow.pop %v1746
        %v1748 = vmul.f32 %v1745, 1.442695
        %v1749 = vpow.pop %v1748
        %v1750 = vsel %vm833, %v1747, 0.0
        %1751 = vadd.xlane.f32.xlu0 %v1750
        %v1752 = vpop.xlane.xlu0 %1751
        %v1753 = vsel %vm833, %v1749, 0.0
        %1754 = vadd.xlane.f32.xlu0 %v1753
        %v1755 = vpop.xlane.xlu0 %1754
        %v1756 = vrcp.pop %v1752
        %v1757 = vrcp.pop %v1755
        %v1758 = vmul.f32 %v1747, %v1756
        %v1759 = vmul.f32 %v1749, %v1757
        %v1760 = vpack.c.bf16 %v1758, %v1758
        %v1761 = vpack.c.bf16 %v1759, %v1759
        %1762 = vrot.lane.b32.xlu0 %v823, 40
        %v1763 = vpop.permute.xlu0 %1762
        %v1765 = vsel %vm833, %v1760, 0
        %v1768 = vsel %vm957, %v1763, 0
        %1770 = vmatprep.subr.bf16.mxu0 0
        %1771 = vmatpush1.bf16.msra.mxu0 %v1768
        %1772 = vmatprep.subr.bf16.mxu0 0
        %1773 = vmatpush1.bf16.msra.mxu0 0
        %1774 = vmatprep.subr.bf16.mxu0 0
        %1775 = vmatpush1.bf16.msra.mxu0 0
        %1776 = vmatprep.subr.bf16.mxu0 0
        %1777 = vmatpush1.bf16.msra.mxu0 0
        %1778 = vmatprep.subr.bf16.mxu0 0
        %1779 = vmatpush1.bf16.msra.mxu0 0
        %1780 = vmatprep.subr.bf16.mxu0 0
        %1781 = vmatpush1.bf16.msra.mxu0 0
        %1782 = vmatprep.subr.bf16.mxu0 0
        %1783 = vmatpush1.bf16.msra.mxu0 0
        %1784 = vmatprep.subr.bf16.mxu0 0
        %1785 = vmatpush1.bf16.msra.mxu0 0
        %1786 = vmatprep.subr.bf16.mxu0 0
        %1787 = vmatpush1.bf16.msra.mxu0 0
        %1788 = vmatprep.subr.bf16.mxu0 0
        %1789 = vmatpush1.bf16.msra.mxu0 0
        %1790 = vmatprep.subr.bf16.mxu0 0
        %1791 = vmatpush1.bf16.msra.mxu0 0
        %1792 = vmatprep.subr.bf16.mxu0 0
        %1793 = vmatpush1.bf16.msra.mxu0 0
        %1794 = vmatprep.subr.bf16.mxu0 0
        %1795 = vmatpush1.bf16.msra.mxu0 0
        %1796 = vmatprep.subr.bf16.mxu0 0
        %1797 = vmatpush1.bf16.msra.mxu0 0
        %1798 = vmatprep.subr.bf16.mxu0 0
        %1799 = vmatpush1.bf16.msra.mxu0 0
        %1800 = vmatprep.subr.bf16.mxu0 0
        %1801 = vmatpush1.bf16.msra.mxu0 0
        %1802 = vmatprep.mubr.bf16.mxu0 0
        %1803 = vmatmul.mubr.bf16.gmra.mrb[0].mxu0 %v1765
        %v1804 = vpop.f32.mrb[0].mxu0
        %v1805 = vadd.f32 0.0, %v1804
        %v1806 = vpop.f32.mrb[0].mxu0
        %v1807 = vpop.f32.mrb[0].mxu0
        %v1808 = vpop.f32.mrb[0].mxu0
        %1809 = vdwg.mxu0
        %1810 = vrot.lane.b32.xlu0 %v824, 40
        %v1811 = vpop.permute.xlu0 %1810
        %v1813 = vsel %vm833, %v1761, 0
        %v1816 = vsel %vm957, %v1811, 0
        %1818 = vmatprep.subr.bf16.mxu0 0
        %1819 = vmatpush1.bf16.msra.mxu0 %v1816
        %1820 = vmatprep.subr.bf16.mxu0 0
        %1821 = vmatpush1.bf16.msra.mxu0 0
        %1822 = vmatprep.subr.bf16.mxu0 0
        %1823 = vmatpush1.bf16.msra.mxu0 0
        %1824 = vmatprep.subr.bf16.mxu0 0
        %1825 = vmatpush1.bf16.msra.mxu0 0
        %1826 = vmatprep.subr.bf16.mxu0 0
        %1827 = vmatpush1.bf16.msra.mxu0 0
        %1828 = vmatprep.subr.bf16.mxu0 0
        %1829 = vmatpush1.bf16.msra.mxu0 0
        %1830 = vmatprep.subr.bf16.mxu0 0
        %1831 = vmatpush1.bf16.msra.mxu0 0
        %1832 = vmatprep.subr.bf16.mxu0 0
        %1833 = vmatpush1.bf16.msra.mxu0 0
        %1834 = vmatprep.subr.bf16.mxu0 0
        %1835 = vmatpush1.bf16.msra.mxu0 0
        %1836 = vmatprep.subr.bf16.mxu0 0
        %1837 = vmatpush1.bf16.msra.mxu0 0
        %1838 = vmatprep.subr.bf16.mxu0 0
        %1839 = vmatpush1.bf16.msra.mxu0 0
        %1840 = vmatprep.subr.bf16.mxu0 0
        %1841 = vmatpush1.bf16.msra.mxu0 0
        %1842 = vmatprep.subr.bf16.mxu0 0
        %1843 = vmatpush1.bf16.msra.mxu0 0
        %1844 = vmatprep.subr.bf16.mxu0 0
        %1845 = vmatpush1.bf16.msra.mxu0 0
        %1846 = vmatprep.subr.bf16.mxu0 0
        %1847 = vmatpush1.bf16.msra.mxu0 0
        %1848 = vmatprep.subr.bf16.mxu0 0
        %1849 = vmatpush1.bf16.msra.mxu0 0
        %1850 = vmatprep.mubr.bf16.mxu0 0
        %1851 = vmatmul.mubr.bf16.gmra.mrb[0].mxu0 %v1813
        %v1852 = vpop.f32.mrb[0].mxu0
        %v1853 = vadd.f32 0.0, %v1852
        %v1854 = vpop.f32.mrb[0].mxu0
        %v1855 = vpop.f32.mrb[0].mxu0
        %v1856 = vpop.f32.mrb[0].mxu0
        %1857 = vdwg.mxu0
        %v1858 = vpack.c.bf16 %v1853, %v1805
        %v1859 = vld [vmem:[%s666 + $0xc] sm:$0xf]
        %v1861 = vsel %vm833, %v1858, 0
        %v1864 = vsel %vm957, %v1859, 0
        %1866 = vmatprep.subr.bf16.mxu0 0
        %1867 = vmatpush1.bf16.msra.mxu0 %v1864
        %1868 = vmatprep.subr.bf16.mxu0 0
        %1869 = vmatpush1.bf16.msra.mxu0 0
        %1870 = vmatprep.subr.bf16.mxu0 0
        %1871 = vmatpush1.bf16.msra.mxu0 0
        %1872 = vmatprep.subr.bf16.mxu0 0
        %1873 = vmatpush1.bf16.msra.mxu0 0
        %1874 = vmatprep.subr.bf16.mxu0 0
        %1875 = vmatpush1.bf16.msra.mxu0 0
        %1876 = vmatprep.subr.bf16.mxu0 0
        %1877 = vmatpush1.bf16.msra.mxu0 0
        %1878 = vmatprep.subr.bf16.mxu0 0
        %1879 = vmatpush1.bf16.msra.mxu0 0
        %1880 = vmatprep.subr.bf16.mxu0 0
        %1881 = vmatpush1.bf16.msra.mxu0 0
        %1882 = vmatprep.subr.bf16.mxu0 0
        %1883 = vmatpush1.bf16.msra.mxu0 0
        %1884 = vmatprep.subr.bf16.mxu0 0
        %1885 = vmatpush1.bf16.msra.mxu0 0
        %1886 = vmatprep.subr.bf16.mxu0 0
        %1887 = vmatpush1.bf16.msra.mxu0 0
        %1888 = vmatprep.subr.bf16.mxu0 0
        %1889 = vmatpush1.bf16.msra.mxu0 0
        %1890 = vmatprep.subr.bf16.mxu0 0
        %1891 = vmatpush1.bf16.msra.mxu0 0
        %1892 = vmatprep.subr.bf16.mxu0 0
        %1893 = vmatpush1.bf16.msra.mxu0 0
        %1894 = vmatprep.subr.bf16.mxu0 0
        %1895 = vmatpush1.bf16.msra.mxu0 0
        %1896 = vmatprep.subr.bf16.mxu0 0
        %1897 = vmatpush1.bf16.msra.mxu0 0
        %1898 = vmatprep.mubr.bf16.mxu0 0
        %1899 = vmatmul.mubr.bf16.gmra.mrb[0].mxu0 %v1861
        %v1900 = vpop.f32.mrb[0].mxu0
        %v1901 = vadd.f32 0.0, %v1900
        %v1902 = vpop.f32.mrb[0].mxu0
        %v1903 = vpop.f32.mrb[0].mxu0
        %v1904 = vadd.f32 0.0, %v1903
        %v1905 = vpop.f32.mrb[0].mxu0
        %1906 = vdwg.mxu0
        %v1907 = vadd.f32 %v1636, %v1901
        %v1908 = vadd.f32 %v1637, %v1904
        %v1909 = vadd.f32 %v703, %v1907
        %v1910 = vadd.f32 %v704, %v1908
        %v1911 = vld [vmem:[%s669] sm:$0x1]
        %v1913 = vlaneseq
        %v1914 = vshrl.u32 %v1913, 7
        %v1915 = vsub.s32 0, %v1914
        %v1916 = vrot.slane %v1911, %v1915
        %v1918 = vadd.f32 %v1909, %v1916
        %v1919 = vadd.f32 %v1910, %v1916
        %v1920 = vld [vmem:[%s672] sm:$0x1]
        %v1921 = vld [vmem:[%s675] sm:$0x1]
        %v1922 = vsel %vm707, %v1918, 0.0
        %1923 = vadd.xlane.f32.xlu0 %v1922
        %v1924 = vpop.xlane.xlu0 %1923
        %v1925 = vsel %vm707, %v1919, 0.0
        %1926 = vadd.xlane.f32.xlu0 %v1925
        %v1927 = vpop.xlane.xlu0 %1926
        %v1928 = vmul.f32 %v1924, %v714
        %v1929 = vmul.f32 %v1927, %v714
        %v1930 = vsub.f32 %v1918, %v1928
        %v1931 = vsub.f32 %v1919, %v1929
        %v1932 = vmul.f32 %v1930, %v1930
        %v1933 = vmul.f32 %v1931, %v1931
        %v1934 = vsel %vm707, %v1932, 0.0
        %1935 = vadd.xlane.f32.xlu0 %v1934
        %v1936 = vpop.xlane.xlu0 %1935
        %v1937 = vsel %vm707, %v1933, 0.0
        %1938 = vadd.xlane.f32.xlu0 %v1937
        %v1939 = vpop.xlane.xlu0 %1938
        %v1940 = vmul.f32 %v1936, %v714
        %v1941 = vmul.f32 %v1939, %v714
        %v1942 = vadd.f32 %v1940, 1e-05
        %v1943 = vadd.f32 %v1941, 1e-05
        %v1944 = vrsqrt.pop %v1942
        %v1945 = vrsqrt.pop %v1943
        %v1946 = vmul.f32 %v1930, %v1944
        %v1947 = vmul.f32 %v1931, %v1945
        %v1949 = vlaneseq
        %v1950 = vshrl.u32 %v1949, 7
        %v1951 = vsub.s32 0, %v1950
        %v1952 = vrot.slane %v1920, %v1951
        %v1954 = vmul.f32 %v1946, %v1952
        %v1955 = vmul.f32 %v1947, %v1952
        %v1957 = vlaneseq
        %v1958 = vshrl.u32 %v1957, 7
        %v1959 = vsub.s32 0, %v1958
        %v1960 = vrot.slane %v1921, %v1959
        %v1962 = vadd.f32 %v1954, %v1960
        %v1963 = vadd.f32 %v1955, %v1960
        %v1964 = vpack.c.bf16 %v1963, %v1962
        %v1965 = vld [vmem:[%s680] sm:$0xf]
        %v1966 = vld [vmem:[%s680 + $0x4] sm:$0xf]
        %v1967 = vld [vmem:[%s680 + $0x8] sm:$0xf]
        %v1968 = vld [vmem:[%s680 + $0xc] sm:$0xf]
        %v1969 = vld [vmem:[%s683] sm:$0x1]
        %v1971 = vlaneseq
        %v1972 = vshrl.u32 %v1971, 7
        %v1973 = vsub.s32 0, %v1972
        %v1974 = vrot.slane %v1969, %v1973
        %v1980 = vunpack.c.l.b16 %v1965
        %v1981 = vunpack.c.l.b16 %v1966
        %v1982 = vunpack.c.l.b16 %v1967
        %v1983 = vunpack.c.l.b16 %v1968
        %v1984 = vpack.c.b16 %v1981, %v1980
        %v1985 = vpack.c.b16 %v1983, %v1982
        %v1989 = vsel %vm707, %v1964, 0
        %1991 = vmatprep.subr.bf16.mxu0 0
        %1992 = vmatpush1.bf16.msra.mxu0 %v1984
        %1993 = vmatprep.subr.bf16.mxu0 0
        %1994 = vmatpush1.bf16.msra.mxu0 %v1985
        %1995 = vmatprep.subr.bf16.mxu0 0
        %1996 = vmatpush1.bf16.msra.mxu0 0
        %1997 = vmatprep.subr.bf16.mxu0 0
        %1998 = vmatpush1.bf16.msra.mxu0 0
        %1999 = vmatprep.subr.bf16.mxu0 0
        %2000 = vmatpush1.bf16.msra.mxu0 0
        %2001 = vmatprep.subr.bf16.mxu0 0
        %2002 = vmatpush1.bf16.msra.mxu0 0
        %2003 = vmatprep.subr.bf16.mxu0 0
        %2004 = vmatpush1.bf16.msra.mxu0 0
        %2005 = vmatprep.subr.bf16.mxu0 0
        %2006 = vmatpush1.bf16.msra.mxu0 0
        %2007 = vmatprep.subr.bf16.mxu0 0
        %2008 = vmatpush1.bf16.msra.mxu0 0
        %2009 = vmatprep.subr.bf16.mxu0 0
        %2010 = vmatpush1.bf16.msra.mxu0 0
        %2011 = vmatprep.subr.bf16.mxu0 0
        %2012 = vmatpush1.bf16.msra.mxu0 0
        %2013 = vmatprep.subr.bf16.mxu0 0
        %2014 = vmatpush1.bf16.msra.mxu0 0
        %2015 = vmatprep.subr.bf16.mxu0 0
        %2016 = vmatpush1.bf16.msra.mxu0 0
        %2017 = vmatprep.subr.bf16.mxu0 0
        %2018 = vmatpush1.bf16.msra.mxu0 0
        %2019 = vmatprep.subr.bf16.mxu0 0
        %2020 = vmatpush1.bf16.msra.mxu0 0
        %2021 = vmatprep.subr.bf16.mxu0 0
        %2022 = vmatpush1.bf16.msra.mxu0 0
        %2023 = vmatprep.mubr.bf16.mxu0 0
        %2024 = vmatmul.mubr.bf16.gmra.mrb[0].mxu0 %v1989
        %v2025 = vpop.f32.mrb[0].mxu0
        %v2026 = vadd.f32 %v1974, %v2025
        %v2027 = vpop.f32.mrb[0].mxu0
        %v2028 = vpop.f32.mrb[0].mxu0
        %v2029 = vadd.f32 %v1974, %v2028
        %v2030 = vpop.f32.mrb[0].mxu0
        %2031 = vdwg.mxu0
        %v2032 = vmul.f32 %v2026, 1.702
        %v2033 = vmul.f32 %v2029, 1.702
        %v2034 = vxor.u32 %v2032, 2147483648
        %v2035 = vxor.u32 %v2033, 2147483648
        %v2036 = vmul.f32 %v2034, 1.442695
        %v2037 = vpow.pop %v2036
        %v2038 = vmul.f32 %v2035, 1.442695
        %v2039 = vpow.pop %v2038
        %v2040 = vadd.f32 %v2037, 1.0
        %v2041 = vadd.f32 %v2039, 1.0
        %v2042 = vrcp.pop %v2040
        %v2043 = vmul.f32 1.0, %v2042
        %v2044 = vrcp.pop %v2041
        %v2045 = vmul.f32 1.0, %v2044
        %v2046 = vmul.f32 %v2026, %v2043
        %v2047 = vmul.f32 %v2029, %v2045
        %v2048 = vpack.c.bf16 %v2047, %v2046
        %v2049 = vld [vmem:[%s688] sm:$0xf]
        %v2050 = vld [vmem:[%s688 + $0x4] sm:$0xf]
        %v2051 = vld [vmem:[%s688 + $0x8] sm:$0xf]
        %v2052 = vld [vmem:[%s688 + $0xc] sm:$0xf]
        %v2053 = vld [vmem:[%s688 + $0x10] sm:$0xf]
        %v2054 = vld [vmem:[%s688 + $0x14] sm:$0xf]
        %v2055 = vld [vmem:[%s688 + $0x18] sm:$0xf]
        %v2056 = vld [vmem:[%s688 + $0x1c] sm:$0xf]
        %v2057 = vld [vmem:[%s688 + $0x20] sm:$0xf]
        %v2058 = vld [vmem:[%s688 + $0x24] sm:$0xf]
        %v2059 = vld [vmem:[%s688 + $0x28] sm:$0xf]
        %v2060 = vld [vmem:[%s688 + $0x2c] sm:$0xf]
        %v2061 = vld [vmem:[%s688 + $0x30] sm:$0xf]
        %v2062 = vld [vmem:[%s688 + $0x34] sm:$0xf]
        %v2063 = vld [vmem:[%s688 + $0x38] sm:$0xf]
        %v2064 = vld [vmem:[%s688 + $0x3c] sm:$0xf]
        %v2065 = vld [vmem:[%s691] sm:$0x1]
        %v2067 = vlaneseq
        %v2068 = vshrl.u32 %v2067, 7
        %v2069 = vsub.s32 0, %v2068
        %v2070 = vrot.slane %v2065, %v2069
        %v2088 = vunpack.c.l.b16 %v2049
        %v2089 = vunpack.c.l.b16 %v2050
        %v2090 = vunpack.c.l.b16 %v2051
        %v2091 = vunpack.c.l.b16 %v2052
        %v2092 = vunpack.c.l.b16 %v2053
        %v2093 = vunpack.c.l.b16 %v2054
        %v2094 = vunpack.c.l.b16 %v2055
        %v2095 = vunpack.c.l.b16 %v2056
        %v2096 = vunpack.c.l.b16 %v2057
        %v2097 = vunpack.c.l.b16 %v2058
        %v2098 = vunpack.c.l.b16 %v2059
        %v2099 = vunpack.c.l.b16 %v2060
        %v2100 = vunpack.c.l.b16 %v2061
        %v2101 = vunpack.c.l.b16 %v2062
        %v2102 = vunpack.c.l.b16 %v2063
        %v2103 = vunpack.c.l.b16 %v2064
        %v2104 = vpack.c.b16 %v2089, %v2088
        %v2105 = vpack.c.b16 %v2091, %v2090
        %v2106 = vpack.c.b16 %v2093, %v2092
        %v2107 = vpack.c.b16 %v2095, %v2094
        %v2108 = vpack.c.b16 %v2097, %v2096
        %v2109 = vpack.c.b16 %v2099, %v2098
        %v2110 = vpack.c.b16 %v2101, %v2100
        %v2111 = vpack.c.b16 %v2103, %v2102
        %2120 = vmatprep.subr.bf16.mxu0 0
        %2121 = vmatpush1.bf16.msra.mxu0 %v2104
        %2122 = vmatprep.subr.bf16.mxu0 0
        %2123 = vmatpush1.bf16.msra.mxu0 %v2105
        %2124 = vmatprep.subr.bf16.mxu0 0
        %2125 = vmatpush1.bf16.msra.mxu0 %v2106
        %2126 = vmatprep.subr.bf16.mxu0 0
        %2127 = vmatpush1.bf16.msra.mxu0 %v2107
        %2128 = vmatprep.subr.bf16.mxu0 0
        %2129 = vmatpush1.bf16.msra.mxu0 %v2108
        %2130 = vmatprep.subr.bf16.mxu0 0
        %2131 = vmatpush1.bf16.msra.mxu0 %v2109
        %2132 = vmatprep.subr.bf16.mxu0 0
        %2133 = vmatpush1.bf16.msra.mxu0 %v2110
        %2134 = vmatprep.subr.bf16.mxu0 0
        %2135 = vmatpush1.bf16.msra.mxu0 %v2111
        %2136 = vmatprep.subr.bf16.mxu0 0
        %2137 = vmatpush1.bf16.msra.mxu0 0
        %2138 = vmatprep.subr.bf16.mxu0 0
        %2139 = vmatpush1.bf16.msra.mxu0 0
        %2140 = vmatprep.subr.bf16.mxu0 0
        %2141 = vmatpush1.bf16.msra.mxu0 0
        %2142 = vmatprep.subr.bf16.mxu0 0
        %2143 = vmatpush1.bf16.msra.mxu0 0
        %2144 = vmatprep.subr.bf16.mxu0 0
        %2145 = vmatpush1.bf16.msra.mxu0 0
        %2146 = vmatprep.subr.bf16.mxu0 0
        %2147 = vmatpush1.bf16.msra.mxu0 0
        %2148 = vmatprep.subr.bf16.mxu0 0
        %2149 = vmatpush1.bf16.msra.mxu0 0
        %2150 = vmatprep.subr.bf16.mxu0 0
        %2151 = vmatpush1.bf16.msra.mxu0 0
        %2152 = vmatprep.mubr.bf16.mxu0 0
        %2153 = vmatmul.mubr.bf16.gmra.mrb[0].mxu0 %v2048
        %v2154 = vpop.f32.mrb[0].mxu0
        %v2155 = vadd.f32 %v2070, %v2154
        %v2156 = vpop.f32.mrb[0].mxu0
        %v2157 = vpop.f32.mrb[0].mxu0
        %v2158 = vadd.f32 %v2070, %v2157
        %v2159 = vpop.f32.mrb[0].mxu0
        %2160 = vdwg.mxu0
        %v2161 = vadd.f32 %v1918, %v2155
        %v2162 = vadd.f32 %v1919, %v2158
        %p2163 = scmp.ne.s32.totalorder %s32, 1
        // Predicated region
        $region85: #{tpu_custom_call.1} parent=79 // pred_check
          %p2164 = pneg %p2163
        $region86: #{tpu_custom_call.1} parent=79 // pred_check_branch
          %2166 = sbr.rel (%p2164) target = $region88
        $region87: #{tpu_custom_call.1} parent=79 // pred_region
          %2167 = vst.msk [vmem:[#allocation2] sm:$0xff] %vm707, %v2161
          %2168 = vst.msk [vmem:[#allocation2 + $0x8] sm:$0xff] %vm707, %v2162
        $region88: #{tpu_custom_call.1} parent=79 // pred_fallthru
          _
        %p2169 = scmp.eq.s32.totalorder %s32, 1
        // Predicated region
        $region89: #{tpu_custom_call.1} parent=79 // pred_check
          %p2170 = pneg %p2169
        $region90: #{tpu_custom_call.1} parent=79 // pred_check_branch
          %2172 = sbr.rel (%p2170) target = $region92
        $region91: #{tpu_custom_call.1} parent=79 // pred_region
          %v2173 = vld [vmem:[%s13] sm:$0x1]
          %v2174 = vld [vmem:[%s14] sm:$0x1]
          %v2175 = vsel %vm707, %v2161, 0.0
          %2176 = vadd.xlane.f32.xlu0 %v2175
          %v2177 = vpop.xlane.xlu0 %2176
          %v2178 = vsel %vm707, %v2162, 0.0
          %2179 = vadd.xlane.f32.xlu0 %v2178
          %v2180 = vpop.xlane.xlu0 %2179
          %v2181 = vmul.f32 %v2177, %v714
          %v2182 = vmul.f32 %v2180, %v714
          %v2183 = vsub.f32 %v2161, %v2181
          %v2184 = vsub.f32 %v2162, %v2182
          %v2185 = vmul.f32 %v2183, %v2183
          %v2186 = vmul.f32 %v2184, %v2184
          %v2187 = vsel %vm707, %v2185, 0.0
          %2188 = vadd.xlane.f32.xlu0 %v2187
          %v2189 = vpop.xlane.xlu0 %2188
          %v2190 = vsel %vm707, %v2186, 0.0
          %2191 = vadd.xlane.f32.xlu0 %v2190
          %v2192 = vpop.xlane.xlu0 %2191
          %v2193 = vmul.f32 %v2189, %v714
          %v2194 = vmul.f32 %v2192, %v714
          %v2195 = vadd.f32 %v2193, 1e-05
          %v2196 = vadd.f32 %v2194, 1e-05
          %v2197 = vrsqrt.pop %v2195
          %v2198 = vrsqrt.pop %v2196
          %v2199 = vmul.f32 %v2183, %v2197
          %v2200 = vmul.f32 %v2184, %v2198
          %v2202 = vlaneseq
          %v2203 = vshrl.u32 %v2202, 7
          %v2204 = vsub.s32 0, %v2203
          %v2205 = vrot.slane %v2173, %v2204
          %v2207 = vmul.f32 %v2199, %v2205
          %v2208 = vmul.f32 %v2200, %v2205
          %v2210 = vlaneseq
          %v2211 = vshrl.u32 %v2210, 7
          %v2212 = vsub.s32 0, %v2211
          %v2213 = vrot.slane %v2174, %v2212
          %v2215 = vadd.f32 %v2207, %v2213
          %v2216 = vadd.f32 %v2208, %v2213
          %2217 = vst.msk [vmem:[#allocation2] sm:$0xff] %vm707, %v2215
          %2218 = vst.msk [vmem:[#allocation2 + $0x8] sm:$0xff] %vm707, %v2216
        $region92: #{tpu_custom_call.1} parent=79 // pred_fallthru
          _
        // Predicated region
        $region93: #{tpu_custom_call.1} parent=79 // pred_check
          %p2219 = pneg %p437
        $region94: #{tpu_custom_call.1} parent=79 // pred_check_branch
          %2221 = sbr.rel (%p2219) target = $region96
        $region95: #{tpu_custom_call.1} parent=79 // pred_region
          %s2222 = smul.u32 2, %s31
          %s2224 = ssub.s32 256, 256
          %2225 = vsyncadd [#allocation3], %s2224
          %s2226 = smul.addr %s2222, 128
          %s2227 = scalar_lea.hbm %s15, %s2226
          %s2228 = sshll.u32 [#allocation2], 4
          %s2229 = int_to_ptr.vmem [resolvable:$true] %s2228
          %2234 = dma.vmem_to_hbm [thread:$0]  %s2229, 256, %s2227, [#allocation3], 128, 128, 8
        $region96: #{tpu_custom_call.1} parent=79 // pred_fallthru
          _
        // Predicated region
        $region97: #{tpu_custom_call.1} parent=79 // pred_check
          %p2235 = pneg %p437
        $region98: #{tpu_custom_call.1} parent=79 // pred_check_branch
          %2237 = sbr.rel (%p2235) target = $region100
        $region99: #{tpu_custom_call.1} parent=79 // pred_region
          %2238 = dma.done [#allocation3], 256
        $region100: #{tpu_custom_call.1} parent=79 // pred_fallthru
          _
      $region80: #{tpu_custom_call.1} parent=5 // pred_fallthru
        _
      %p2239 = scmp.le.s32.totalorder 2, %s22
      // Predicated region
      $region101: #{tpu_custom_call.1} parent=5 // pred_check
        %p2240 = pneg %p2239
      $region102: #{tpu_custom_call.1} parent=5 // pred_check_branch
        %2242 = sbr.rel (%p2240) target = $region104
      $region103: #{tpu_custom_call.1} parent=5 // pred_region
        %s2243 = ssub.s32 %s22, 2
      $region104: #{tpu_custom_call.1} parent=5 // pred_fallthru
        _
    $region6: #{tpu_custom_call.1} parent=1 // loop_footer
      %s26 = sadd.s32 1, %s22
    $region7: #{tpu_custom_call.1} parent=1 // loop_footer_branch
      %21 = sbr.rel target = $region3
    $region8: #{tpu_custom_call.1} parent=1 // loop_exit
      _
    %2244 = vsyncpa [#allocation3], 1
    %s2245 = scalar_lea.sflag [#allocation3], 1
    %2246 = vsyncpa %s2245, 1

</llo_original>
